<compile_context>
chip_gen: v7x
topology: tpu7x:2x2x1
jax: 0.10.0
libtpu: 0.0.40
codegen_flags: <defaults>
</compile_context>

<pallas_src>
import jax
import jax.numpy as jnp
from jax.experimental import pallas as pl
from jax.experimental.pallas import tpu as pltpu

C_IN = 3
C_OUT = 64
KH = KW = 3


def _conv_row_kernel(x_ref, w_ref, b_ref, o_ref):
    """One (batch, output-row-tile) grid step.

    x_ref: (1, H_pad, W*C_IN)          lane-dense input image (VMEM-resident)
    w_ref: (KH, W*C_IN, w_out*C_OUT)   banded (Toeplitz) weights
    b_ref: (1, w_out*C_OUT)            bias, pre-tiled per output column
    o_ref: (1, th, w_out*C_OUT)        lane-dense output row tile
    """
    th = o_ref.shape[1]
    n_lanes = o_ref.shape[2]
    row0 = pl.program_id(1) * th

    # Accumulator initialized with a single hoisted bias broadcast
    # (no separate full-size bias add pass after the matmuls).
    acc = jnp.broadcast_to(b_ref[...], (th, n_lanes)).astype(jnp.float32)

    # One MXU matmul per kernel row: (th, W*C_IN) x (W*C_IN, w_out*C_OUT).
    # The LHS is a plain contiguous row slab - no im2col / relayout needed.
    for kh in range(KH):
        slab = x_ref[0, pl.ds(row0 + kh, th), :]            # (th, W*C_IN)
        acc = acc + jnp.dot(slab, w_ref[kh],
                            preferred_element_type=jnp.float32)

    o_ref[0] = acc.astype(o_ref.dtype)                      # full-width store


def _pick_row_tile(h_out, target=32):
    """Row tile: full h_out if small, else a multiple of 8 (block rule)."""
    if h_out <= target:
        return h_out
    return (target // 8) * 8


def _pack_banded_weights(weight_oihw, w_in, w_out):
    """Pack OIHW conv weights into per-kh banded matrices.

    band[kh, i*C_IN + cin, c*C_OUT + co] = w[kh, kw, cin, co]  if i == c + kw
                                           0                   otherwise
    so that  out_row = x_row_slab @ band[kh]  performs the width convolution
    for kernel row kh with a lane-dense output.
    """
    w_hwio = jnp.transpose(weight_oihw, (2, 3, 1, 0)).astype(jnp.float32)
    # shift[kw, i, c] = 1  iff  input column i == output column c + kw
    shift = jnp.stack([jnp.eye(w_in, w_out, k=-kw, dtype=jnp.float32)
                       for kw in range(KW)])
    band6 = jnp.einsum('kij,hkcz->hicjz', shift, w_hwio)
    return band6.reshape(KH, w_in * C_IN, w_out * C_OUT)


def tudui_forward(x_nchw, weight_oihw, bias, *, row_tile=None):
    """Forward pass of Tudui.  x_nchw: (N, 3, H, W) float32 -> (N, 64, H-2, W-2)."""
    n, c, h, w = x_nchw.shape
    assert c == C_IN
    h_out, w_out = h - KH + 1, w - KW + 1

    th = row_tile if row_tile is not None else _pick_row_tile(h_out)
    num_t = (h_out + th - 1) // th
    h_pad = num_t * th + (KH - 1)

    # --- wrapper-side layout plumbing only (all conv compute is in-kernel) ---
    x_lane = jnp.transpose(x_nchw, (0, 2, 3, 1)).reshape(n, h, w * C_IN)
    if h_pad > h:
        x_lane = jnp.pad(x_lane, ((0, 0), (0, h_pad - h), (0, 0)))
    band = _pack_banded_weights(weight_oihw, w, w_out)        # (KH, W*3, w_out*64)
    bias_lane = jnp.tile(bias.astype(jnp.float32), w_out).reshape(1, w_out * C_OUT)

    out_lane = pl.pallas_call(
        _conv_row_kernel,
        out_shape=jax.ShapeDtypeStruct((n, h_out, w_out * C_OUT), x_nchw.dtype),
        grid_spec=pltpu.PrefetchScalarGridSpec(
            num_scalar_prefetch=0,
            grid=(n, num_t),
            in_specs=[
                pl.BlockSpec((1, h_pad, w * C_IN), lambda i, t: (i, 0, 0)),
                pl.BlockSpec((KH, w * C_IN, w_out * C_OUT), lambda i, t: (0, 0, 0)),
                pl.BlockSpec((1, w_out * C_OUT), lambda i, t: (0, 0)),
            ],
            out_specs=pl.BlockSpec((1, th, w_out * C_OUT), lambda i, t: (i, t, 0)),
        ),
        compiler_params=pltpu.CompilerParams(
            dimension_semantics=("parallel", "parallel"),
            vmem_limit_bytes=32 * 1024 * 1024),
    )(x_lane, band, bias_lane)

    # Back to NCHW (free reshuffle outside the kernel).
    return out_lane.reshape(n, h_out, w_out, C_OUT).transpose(0, 3, 1, 2)


if __name__ == "__main__":
    key = jax.random.PRNGKey(0)
    k_x, k_w, k_b = jax.random.split(key, 3)

    # Small deterministic inputs / parameters (synthetic, no checkpoint load).
    N, H, W = 2, 16, 16
    x = jax.random.normal(k_x, (N, C_IN, H, W), dtype=jnp.float32)
    # Conv2d(3, 64, kernel_size=3) parameter shapes: weight OIHW, bias (O,)
    fan_in = C_IN * KH * KW
    bound = 1.0 / (fan_in ** 0.5)
    weight = jax.random.uniform(k_w, (C_OUT, C_IN, KH, KW),
                                minval=-bound, maxval=bound, dtype=jnp.float32)
    bias = jax.random.uniform(k_b, (C_OUT,),
                              minval=-bound, maxval=bound, dtype=jnp.float32)

    out = jax.block_until_ready(tudui_forward(x, weight, bias))

    # Cross-check against the XLA reference convolution.
    ref = jax.lax.conv_general_dilated(
        x, weight, window_strides=(1, 1), padding="VALID",
        dimension_numbers=("NCHW", "OIHW", "NCHW")) + bias[None, :, None, None]
    assert out.shape == (N, C_OUT, H - 2, W - 2), out.shape
    assert jnp.allclose(out, ref, atol=2e-4, rtol=2e-4), \
        float(jnp.max(jnp.abs(out - ref)))

    print("KERNEL_OK")
</pallas_src>

<mosaic_0001>
module attributes {stable_mosaic.version = 11 : i64} {
  func.func @_conv_row_kernel(%arg0: i32, %arg1: i32, %arg2: memref<1x16x48xf32, #tpu.memory_space<vmem>>, %arg3: memref<3x48x896xf32, #tpu.memory_space<vmem>>, %arg4: memref<1x896xf32, #tpu.memory_space<vmem>>, %arg5: memref<1x14x896xf32, #tpu.memory_space<vmem>>) attributes {dimension_semantics = [#tpu.dimension_semantics<parallel>, #tpu.dimension_semantics<parallel>], iteration_bounds = array<i64: 2, 1>, scalar_prefetch = 0 : i64, scratch_operands = 0 : i64, tpu.core_type = #tpu.core_type<tc>, window_params = [{transform_indices = @transform_0, window_bounds = array<i64: 1, 16, 48>}, {pipeline_mode = #tpu.pipeline_mode<synchronous>, transform_indices = @transform_1, window_bounds = array<i64: 3, 48, 896>}, {pipeline_mode = #tpu.pipeline_mode<synchronous>, transform_indices = @transform_2, window_bounds = array<i64: 1, 896>}, {transform_indices = @transform_3, window_bounds = array<i64: 1, 14, 896>}]} {
    %c14_i32 = arith.constant 14 : i32
    %0 = arith.muli %arg1, %c14_i32 : i32
    %c0 = arith.constant 0 : index
    %c0_0 = arith.constant 0 : index
    %1 = vector.load %arg4[%c0, %c0_0] : memref<1x896xf32, #tpu.memory_space<vmem>>, vector<1x896xf32>
    %2 = vector.shape_cast %1 : vector<1x896xf32> to vector<1x896xf32>
    %3 = vector.broadcast %2 : vector<1x896xf32> to vector<14x896xf32>
    %c0_i32 = arith.constant 0 : i32
    %4 = arith.addi %0, %c0_i32 : i32
    %c0_1 = arith.constant 0 : index
    %5 = arith.index_cast %4 : i32 to index
    %c0_2 = arith.constant 0 : index
    %6 = vector.load %arg2[%c0_1, %5, %c0_2] : memref<1x16x48xf32, #tpu.memory_space<vmem>>, vector<1x14x48xf32>
    %7 = vector.shape_cast %6 : vector<1x14x48xf32> to vector<14x48xf32>
    %c0_3 = arith.constant 0 : index
    %c0_4 = arith.constant 0 : index
    %c0_5 = arith.constant 0 : index
    %8 = vector.load %arg3[%c0_3, %c0_4, %c0_5] : memref<3x48x896xf32, #tpu.memory_space<vmem>>, vector<1x48x896xf32>
    %9 = vector.shape_cast %8 : vector<1x48x896xf32> to vector<48x896xf32>
    %cst = arith.constant dense<0.000000e+00> : vector<14x896xf32>
    %10 = tpu.matmul %7, %9, %cst {dimension_numbers = #tpu.dot_dimension_numbers<[1], [0], [0], [1], [0, 0, 1, 1], [], []>} : vector<14x48xf32>, vector<48x896xf32>, vector<14x896xf32> -> vector<14x896xf32>
    %11 = arith.addf %3, %10 : vector<14x896xf32>
    %c1_i32 = arith.constant 1 : i32
    %12 = arith.addi %0, %c1_i32 : i32
    %c0_6 = arith.constant 0 : index
    %13 = arith.index_cast %12 : i32 to index
    %c0_7 = arith.constant 0 : index
    %14 = vector.load %arg2[%c0_6, %13, %c0_7] : memref<1x16x48xf32, #tpu.memory_space<vmem>>, vector<1x14x48xf32>
    %15 = vector.shape_cast %14 : vector<1x14x48xf32> to vector<14x48xf32>
    %c1 = arith.constant 1 : index
    %c0_8 = arith.constant 0 : index
    %c0_9 = arith.constant 0 : index
    %16 = vector.load %arg3[%c1, %c0_8, %c0_9] : memref<3x48x896xf32, #tpu.memory_space<vmem>>, vector<1x48x896xf32>
    %17 = vector.shape_cast %16 : vector<1x48x896xf32> to vector<48x896xf32>
    %cst_10 = arith.constant dense<0.000000e+00> : vector<14x896xf32>
    %18 = tpu.matmul %15, %17, %cst_10 {dimension_numbers = #tpu.dot_dimension_numbers<[1], [0], [0], [1], [0, 0, 1, 1], [], []>} : vector<14x48xf32>, vector<48x896xf32>, vector<14x896xf32> -> vector<14x896xf32>
    %19 = arith.addf %11, %18 : vector<14x896xf32>
    %c2_i32 = arith.constant 2 : i32
    %20 = arith.addi %0, %c2_i32 : i32
    %c0_11 = arith.constant 0 : index
    %21 = arith.index_cast %20 : i32 to index
    %c0_12 = arith.constant 0 : index
    %22 = vector.load %arg2[%c0_11, %21, %c0_12] : memref<1x16x48xf32, #tpu.memory_space<vmem>>, vector<1x14x48xf32>
    %23 = vector.shape_cast %22 : vector<1x14x48xf32> to vector<14x48xf32>
    %c2 = arith.constant 2 : index
    %c0_13 = arith.constant 0 : index
    %c0_14 = arith.constant 0 : index
    %24 = vector.load %arg3[%c2, %c0_13, %c0_14] : memref<3x48x896xf32, #tpu.memory_space<vmem>>, vector<1x48x896xf32>
    %25 = vector.shape_cast %24 : vector<1x48x896xf32> to vector<48x896xf32>
    %cst_15 = arith.constant dense<0.000000e+00> : vector<14x896xf32>
    %26 = tpu.matmul %23, %25, %cst_15 {dimension_numbers = #tpu.dot_dimension_numbers<[1], [0], [0], [1], [0, 0, 1, 1], [], []>} : vector<14x48xf32>, vector<48x896xf32>, vector<14x896xf32> -> vector<14x896xf32>
    %27 = arith.addf %19, %26 : vector<14x896xf32>
    %c0_16 = arith.constant 0 : index
    %c0_17 = arith.constant 0 : index
    %c0_18 = arith.constant 0 : index
    %28 = vector.load %arg5[%c0_16, %c0_17, %c0_18] : memref<1x14x896xf32, #tpu.memory_space<vmem>>, vector<1x14x896xf32>
    %29 = vector.shape_cast %28 : vector<1x14x896xf32> to vector<14x896xf32>
    %30 = vector.shape_cast %27 : vector<14x896xf32> to vector<1x14x896xf32>
    tpu.vector_store %arg5[%c0_16, %c0_17, %c0_18], %30 {strides = array<i32>} : memref<1x14x896xf32, #tpu.memory_space<vmem>>, vector<1x14x896xf32>,
    return
  }
  func.func @transform_0(%arg0: i32, %arg1: i32) -> (i32, i32, i32) {
    %c0_i32 = arith.constant 0 : i32
    %c0_i32_0 = arith.constant 0 : i32
    %c0_i32_1 = arith.constant 0 : i32
    return %arg0, %c0_i32, %c0_i32_0 : i32, i32, i32
  }
  func.func @transform_1(%arg0: i32, %arg1: i32) -> (i32, i32, i32) {
    %c0_i32 = arith.constant 0 : i32
    %c0_i32_0 = arith.constant 0 : i32
    %c0_i32_1 = arith.constant 0 : i32
    %c0_i32_2 = arith.constant 0 : i32
    return %c0_i32, %c0_i32_0, %c0_i32_1 : i32, i32, i32
  }
  func.func @transform_2(%arg0: i32, %arg1: i32) -> (i32, i32) {
    %c0_i32 = arith.constant 0 : i32
    %c0_i32_0 = arith.constant 0 : i32
    %c0_i32_1 = arith.constant 0 : i32
    return %c0_i32, %c0_i32_0 : i32, i32
  }
  func.func @transform_3(%arg0: i32, %arg1: i32) -> (i32, i32, i32) {
    %c0_i32 = arith.constant 0 : i32
    %c0_i32_0 = arith.constant 0 : i32
    return %arg0, %arg1, %c0_i32 : i32, i32, i32
  }
}

</mosaic_0001>

<llo_original>
// kernel: tpu_custom_call.1
$region0: #{tpu_custom_call.1}
  #allocation0 [shape = 'u32[]', space=smem, size = 0x4, offset = 0x4, fixed_abs, tag = 'smem constant byte address 0x4 - core index']
  #allocation1 [shape = 'u32[144,128]{1,0:T(1,128)}', space=vmem, size = 0x12000, scoped, tag = 'internal scratch']
  %s0 = inlined_call_operand.hbm [shape: f32[2,16,48], index: 0, kind: input, shape index: {}]
  %s1 = inlined_call_operand.hbm [shape: f32[3,48,896], index: 1, kind: input, shape index: {}]
  %s2 = inlined_call_operand.vmem [shape: f32[1,896], index: 2, kind: input, shape index: {}]
  %s3 = inlined_call_operand.vmem [shape: f32[2,14,896], index: 3, kind: output, shape index: {}]
  %s4 = sld [smem:[#allocation0]]
  $region53: #{tpu_custom_call.1} parent=0
    _
  %s6 = ssub.s32 1, %s4
  %s7 = scalar_select 0, %s6, %s4
  $region1: #{tpu_custom_call.1} parent=0
    #allocation2 [shape = 'u8[16384]{0}', space=vmem, size = 0x4000, scoped, tag = 'input window, operand 0']
    #allocation3 [shape = 's32[2]{0}', space=sflag, size = 0x8, scoped, tag = 'scoped memory for tpu_custom_call.1']
    #allocation4 [shape = 'u8[516096]{0}', space=vmem, size = 0x7e000, scoped, tag = 'input window, operand 1, single buffered']
    #allocation5 [shape = 's32[1]{0}', space=sflag, size = 0x4, scoped, tag = 'scoped memory for tpu_custom_call.1']
    %8 = vsyncpa [#allocation3], 0
    %s9 = scalar_lea.sflag [#allocation3], 1
    %10 = vsyncpa %s9, 0
    %11 = vsyncpa [#allocation5], 0
    loop: start=0, step=1, limit=4
    $region2: #{tpu_custom_call.1} parent=1 // loop_pre_header
      _
    $region3: #{tpu_custom_call.1} parent=1 // loop_header
      %s13 = sphi 0, %s17
      %p14 = scmp.ge.s32.totalorder %s13, 4
      %s20 = sphi 0, %s32
      %s21 = sphi 0, %s28
      %s22 = sphi 0, %s20
      %s23 = sphi 0, %s21
      %s24 = sphi 0, %s22
      %s25 = sphi 0, %s23
      %s35 = sphi 0, %s37
      %s38 = sphi 0, %s35
      %s39 = sphi 0, %s38
      %s55 = sphi 0, %s39
      %s59 = sphi 0, %s59
      %s61 = sphi 0, %s59
      %s62 = sphi 0, %s61
      %s76 = sphi 0, %s62
      %s80 = sphi 0, %s80
      %s82 = sphi 0, %s80
      %s83 = sphi 0, %s82
      %s97 = sphi 0, %s83
      %s105 = sphi 0, %s107
      %s108 = sphi 0, %s105
      %s109 = sphi 0, %s108
      %s125 = sphi 0, %s109
    $region4: #{tpu_custom_call.1} parent=1 // loop_header_branch
      %16 = sbr.rel (%p14) target = $region8
    $region5: #{tpu_custom_call.1} parent=1 // loop_body
      %s18 = ssub.s32 %s13, 1
      %s19 = ssub.s32 %s13, 2
      %s26 = sadd.s32 1, %s21
      %p27 = scmp.ge.s32.totalorder %s26, 1
      %s28 = scalar_select %p27, 0, %s26
      %s29 = sadd.s32 1, %s20
      %s30 = scalar_select %p27, %s29, %s20
      %p31 = scmp.ge.s32.totalorder %s30, 2
      %s32 = scalar_select %p31, 0, %s30
      %s33 = ssub.s32 %s20, %s32
      %p34 = scmp.eq.s32.totalorder %s33, 0
      %s36 = sadd.s32 %s35, 1
      %s37 = scalar_select %p34, %s35, %s36
      %p40 = pneg %p34
      %p41 = scmp.eq.s32.totalorder %s13, 1
      %p42 = por %p40, %p41
      %p43 = scmp.ne.s32.totalorder %s35, %s38
      %p44 = scmp.eq.s32.totalorder %s13, 0
      %p45 = por %p43, %p44
      %p46 = scmp.ne.s32.totalorder %s35, %s38
      %p47 = scmp.eq.s32.totalorder %s18, 1
      %p48 = por %p46, %p47
      %p49 = scmp.ne.s32.totalorder %s38, %s39
      %p50 = scmp.eq.s32.totalorder %s18, 0
      %p51 = por %p49, %p50
      %p52 = scmp.ne.s32.totalorder %s38, %s39
      %p53 = scmp.eq.s32.totalorder %s19, 1
      %p54 = por %p52, %p53
      %p56 = scmp.ne.s32.totalorder %s39, %s55
      %p57 = scmp.eq.s32.totalorder %s19, 0
      %p58 = por %p56, %p57
      %s60 = sadd.s32 %s59, 1
      %p63 = scmp.eq.s32.totalorder %s13, 1
      %p64 = scmp.ne.s32.totalorder %s59, %s61
      %p65 = scmp.eq.s32.totalorder %s13, 0
      %p66 = por %p64, %p65
      %p67 = scmp.ne.s32.totalorder %s59, %s61
      %p68 = scmp.eq.s32.totalorder %s18, 1
      %p69 = por %p67, %p68
      %p70 = scmp.ne.s32.totalorder %s61, %s62
      %p71 = scmp.eq.s32.totalorder %s18, 0
      %p72 = por %p70, %p71
      %p73 = scmp.ne.s32.totalorder %s61, %s62
      %p74 = scmp.eq.s32.totalorder %s19, 1
      %p75 = por %p73, %p74
      %p77 = scmp.ne.s32.totalorder %s62, %s76
      %p78 = scmp.eq.s32.totalorder %s19, 0
      %p79 = por %p77, %p78
      %s81 = sadd.s32 %s80, 1
      %p84 = scmp.eq.s32.totalorder %s13, 1
      %p85 = scmp.ne.s32.totalorder %s80, %s82
      %p86 = scmp.eq.s32.totalorder %s13, 0
      %p87 = por %p85, %p86
      %p88 = scmp.ne.s32.totalorder %s80, %s82
      %p89 = scmp.eq.s32.totalorder %s18, 1
      %p90 = por %p88, %p89
      %p91 = scmp.ne.s32.totalorder %s82, %s83
      %p92 = scmp.eq.s32.totalorder %s18, 0
      %p93 = por %p91, %p92
      %p94 = scmp.ne.s32.totalorder %s82, %s83
      %p95 = scmp.eq.s32.totalorder %s19, 1
      %p96 = por %p94, %p95
      %p98 = scmp.ne.s32.totalorder %s83, %s97
      %p99 = scmp.eq.s32.totalorder %s19, 0
      %p100 = por %p98, %p99
      %s101 = ssub.s32 %s20, %s32
      %s102 = ssub.s32 %s21, %s28
      %s103 = sor.u32 %s101, %s102
      %p104 = scmp.eq.s32.totalorder %s103, 0
      %s106 = sadd.s32 %s105, 1
      %s107 = scalar_select %p104, %s105, %s106
      %p110 = pneg %p104
      %p111 = scmp.eq.s32.totalorder %s13, 1
      %p112 = por %p110, %p111
      %p113 = scmp.ne.s32.totalorder %s105, %s108
      %p114 = scmp.eq.s32.totalorder %s13, 0
      %p115 = por %p113, %p114
      %p116 = scmp.ne.s32.totalorder %s105, %s108
      %p117 = scmp.eq.s32.totalorder %s18, 1
      %p118 = por %p116, %p117
      %p119 = scmp.ne.s32.totalorder %s108, %s109
      %p120 = scmp.eq.s32.totalorder %s18, 0
      %p121 = por %p119, %p120
      %p122 = scmp.ne.s32.totalorder %s108, %s109
      %p123 = scmp.eq.s32.totalorder %s19, 1
      %p124 = por %p122, %p123
      %p126 = scmp.ne.s32.totalorder %s109, %s125
      %p127 = scmp.eq.s32.totalorder %s19, 0
      %p128 = por %p126, %p127
      %p129 = scmp.le.s32.totalorder 1, %s13
      %p130 = scmp.lt.s32.totalorder %s13, 3
      %p131 = pnand %p129, %p130
      %p132 = pneg %p131
      // Predicated region
      $region9: #{tpu_custom_call.1} parent=5 // pred_check
        _
      $region10: #{tpu_custom_call.1} parent=5 // pred_check_branch
        %134 = sbr.rel (%p131) target = $region12
      $region11: #{tpu_custom_call.1} parent=5 // pred_region
        %s135 = ssub.s32 %s13, 1
        // Predicated region
        $region13: #{tpu_custom_call.1} parent=11 // pred_check
          %p136 = pneg %p72
        $region14: #{tpu_custom_call.1} parent=11 // pred_check_branch
          %138 = sbr.rel (%p136) target = $region16
        $region15: #{tpu_custom_call.1} parent=11 // pred_region
          %s140 = ssub.s32 16128, 16128
          %141 = vsyncadd [#allocation5], %s140
          %s142 = sshll.u32 [#allocation4], 4
          %s143 = int_to_ptr.vmem [resolvable:$true] %s142
          %148 = dma.hbm_to_vmem [thread:$0]  %s1, 16128, %s143, [#allocation5], 896, 896, 56
        $region16: #{tpu_custom_call.1} parent=11 // pred_fallthru
          _
        // Predicated region
        $region17: #{tpu_custom_call.1} parent=11 // pred_check
          %p149 = pneg %p93
        $region18: #{tpu_custom_call.1} parent=11 // pred_check_branch
          %151 = sbr.rel (%p149) target = $region20
        $region19: #{tpu_custom_call.1} parent=11 // pred_region
          _
        $region20: #{tpu_custom_call.1} parent=11 // pred_fallthru
          _
      $region12: #{tpu_custom_call.1} parent=5 // pred_fallthru
        _
      %p152 = scmp.lt.s32.totalorder %s13, 2
      // Predicated region
      $region21: #{tpu_custom_call.1} parent=5 // pred_check
        %p153 = pneg %p152
      $region22: #{tpu_custom_call.1} parent=5 // pred_check_branch
        %155 = sbr.rel (%p153) target = $region24
      $region23: #{tpu_custom_call.1} parent=5 // pred_region
        // Predicated region
        $region25: #{tpu_custom_call.1} parent=23 // pred_check
          %p156 = pneg %p45
        $region26: #{tpu_custom_call.1} parent=23 // pred_check_branch
          %158 = sbr.rel (%p156) target = $region28
        $region27: #{tpu_custom_call.1} parent=23 // pred_region
          %s159 = sand.u32 %s35, 1
          %s160 = scalar_lea.sflag [#allocation3], %s159
          %s161 = sand.u32 %s35, 1
          %s162 = smul.addr %s161, 16
          %s163 = scalar_lea.vmem [#allocation2], %s162
          %s165 = ssub.s32 256, 256
          %166 = vsyncadd %s160, %s165
          %s167 = smul.addr %s20, 2
          %s168 = smul.addr %s167, 128
          %s169 = scalar_lea.hbm %s0, %s168
          %s170 = sshll.u32 %s163, 4
          %s171 = int_to_ptr.vmem [resolvable:$true] %s170
          %176 = dma.hbm_to_vmem [thread:$0]  %s169, 256, %s171, %s160, 128, 128, 8
        $region28: #{tpu_custom_call.1} parent=23 // pred_fallthru
          _
      $region24: #{tpu_custom_call.1} parent=5 // pred_fallthru
        _
      %p177 = scmp.le.s32.totalorder 1, %s13
      %p178 = scmp.lt.s32.totalorder %s13, 3
      %p179 = pnand %p177, %p178
      %p180 = pneg %p179
      // Predicated region
      $region29: #{tpu_custom_call.1} parent=5 // pred_check
        _
      $region30: #{tpu_custom_call.1} parent=5 // pred_check_branch
        %182 = sbr.rel (%p179) target = $region32
      $region31: #{tpu_custom_call.1} parent=5 // pred_region
        %s183 = ssub.s32 %s13, 1
        %s184 = sand.u32 %s38, 1
        %s185 = scalar_lea.sflag [#allocation3], %s184
        %s186 = sand.u32 %s38, 1
        %s187 = smul.addr %s186, 16
        %s188 = scalar_lea.vmem [#allocation2], %s187
        // Predicated region
        $region33: #{tpu_custom_call.1} parent=31 // pred_check
          %p189 = pneg %p51
        $region34: #{tpu_custom_call.1} parent=31 // pred_check_branch
          %191 = sbr.rel (%p189) target = $region36
        $region35: #{tpu_custom_call.1} parent=31 // pred_region
          %192 = dma.done %s185, 256
        $region36: #{tpu_custom_call.1} parent=31 // pred_fallthru
          _
        // Predicated region
        $region37: #{tpu_custom_call.1} parent=31 // pred_check
          %p193 = pneg %p72
        $region38: #{tpu_custom_call.1} parent=31 // pred_check_branch
          %195 = sbr.rel (%p193) target = $region40
        $region39: #{tpu_custom_call.1} parent=31 // pred_region
          %196 = dma.done [#allocation5], 16128
        $region40: #{tpu_custom_call.1} parent=31 // pred_fallthru
          _
        %s197 = sand.u32 %s38, 1
        %s198 = scalar_lea.sflag [#allocation3], %s197
        %s199 = sand.u32 %s38, 1
        %s200 = smul.addr %s199, 16
        %s201 = scalar_lea.vmem [#allocation2], %s200
        %p202 = pneg %p51
        %p203 = pneg %p48
        %p204 = pneg %p72
        %p205 = pneg %p69
        %p206 = pneg %p93
        %p207 = pneg %p90
        %p208 = pneg %p121
        %p209 = pneg %p118
        %s210 = smul.u32 2, %s23
        %p211 = scmp.lt.s32.totalorder %s22, 1
        %s212 = scalar_select %p211, %s22, 1
        %p213 = scmp.lt.s32.totalorder %s210, 1
        %s214 = scalar_select %p213, %s210, 1
        %s215 = smul.addr %s214, 7
        %s216 = smul.addr %s212, 14
        %s217 = sadd.s32 %s215, %s216
        %s218 = smul.addr %s217, 8
        %s219 = scalar_lea.vmem %s3, %s218
        %s220 = smul.u32 2, %s23
        %p221 = scmp.lt.s32.totalorder %s22, 1
        %s222 = scalar_select %p221, %s22, 1
        %p223 = scmp.lt.s32.totalorder %s220, 1
        %s224 = scalar_select %p223, %s220, 1
        %s225 = smul.addr %s224, 7
        %s226 = smul.addr %s222, 14
        %s227 = sadd.s32 %s225, %s226
        %s228 = smul.addr %s227, 8
        %s229 = scalar_lea.vmem %s3, %s228
        %s230 = smul.u32 2, %s23
        %s231 = smul.u32 %s23, 14
        %v232 = vld [vmem:[%s2] sm:$0xff]
        %v234 = vlaneseq
        %v235 = vshrl.u32 %v234, 7
        %v236 = vsub.s32 0, %v235
        %v237 = vrot.slane %v232, %v236
        %v238 = vlaneseq
        %v239 = vshrl.u32 %v238, 7
        %v240 = vsub.s32 1, %v239
        %v241 = vrot.slane %v232, %v240
        %v242 = vlaneseq
        %v243 = vshrl.u32 %v242, 7
        %v244 = vsub.s32 2, %v243
        %v245 = vrot.slane %v232, %v244
        %v246 = vlaneseq
        %v247 = vshrl.u32 %v246, 7
        %v248 = vsub.s32 3, %v247
        %v249 = vrot.slane %v232, %v248
        %v250 = vlaneseq
        %v251 = vshrl.u32 %v250, 7
        %v252 = vsub.s32 4, %v251
        %v253 = vrot.slane %v232, %v252
        %v254 = vlaneseq
        %v255 = vshrl.u32 %v254, 7
        %v256 = vsub.s32 5, %v255
        %v257 = vrot.slane %v232, %v256
        %v258 = vlaneseq
        %v259 = vshrl.u32 %v258, 7
        %v260 = vsub.s32 6, %v259
        %v261 = vrot.slane %v232, %v260
        %s269 = scalar_lea.vmem %s188, %s231 [#allocation2]
        %v270 = vld [vmem:[%s269] sm:$0xff]
        %v271 = vld [vmem:[%s269 + $0x8] sm:$0x3f]
        %v272 = vld [vmem:[#allocation4] sm:$0xff]
        %v273 = vld [vmem:[#allocation4 + $0x8] sm:$0xff]
        %v274 = vld [vmem:[#allocation4 + $0x10] sm:$0xff]
        %v275 = vld [vmem:[#allocation4 + $0x18] sm:$0xff]
        %v276 = vld [vmem:[#allocation4 + $0x20] sm:$0xff]
        %v277 = vld [vmem:[#allocation4 + $0x28] sm:$0xff]
        %v278 = vld [vmem:[#allocation4 + $0x30] sm:$0xff]
        %v279 = vld [vmem:[#allocation4 + $0x38] sm:$0xff]
        %v280 = vld [vmem:[#allocation4 + $0x40] sm:$0xff]
        %v281 = vld [vmem:[#allocation4 + $0x48] sm:$0xff]
        %v282 = vld [vmem:[#allocation4 + $0x50] sm:$0xff]
        %v283 = vld [vmem:[#allocation4 + $0x58] sm:$0xff]
        %v284 = vld [vmem:[#allocation4 + $0x60] sm:$0xff]
        %v285 = vld [vmem:[#allocation4 + $0x68] sm:$0xff]
        %v286 = vld [vmem:[#allocation4 + $0x70] sm:$0xff]
        %v287 = vld [vmem:[#allocation4 + $0x78] sm:$0xff]
        %v288 = vld [vmem:[#allocation4 + $0x80] sm:$0xff]
        %v289 = vld [vmem:[#allocation4 + $0x88] sm:$0xff]
        %v290 = vld [vmem:[#allocation4 + $0x90] sm:$0xff]
        %v291 = vld [vmem:[#allocation4 + $0x98] sm:$0xff]
        %v292 = vld [vmem:[#allocation4 + $0xa0] sm:$0xff]
        %v293 = vld [vmem:[#allocation4 + $0xa8] sm:$0xff]
        %v294 = vld [vmem:[#allocation4 + $0xb0] sm:$0xff]
        %v295 = vld [vmem:[#allocation4 + $0xb8] sm:$0xff]
        %v296 = vld [vmem:[#allocation4 + $0xc0] sm:$0xff]
        %v297 = vld [vmem:[#allocation4 + $0xc8] sm:$0xff]
        %v298 = vld [vmem:[#allocation4 + $0xd0] sm:$0xff]
        %v299 = vld [vmem:[#allocation4 + $0xd8] sm:$0xff]
        %v300 = vld [vmem:[#allocation4 + $0xe0] sm:$0xff]
        %v301 = vld [vmem:[#allocation4 + $0xe8] sm:$0xff]
        %v302 = vld [vmem:[#allocation4 + $0xf0] sm:$0xff]
        %v303 = vld [vmem:[#allocation4 + $0xf8] sm:$0xff]
        %v304 = vld [vmem:[#allocation4 + $0x100] sm:$0xff]
        %v305 = vld [vmem:[#allocation4 + $0x108] sm:$0xff]
        %v306 = vld [vmem:[#allocation4 + $0x110] sm:$0xff]
        %v307 = vld [vmem:[#allocation4 + $0x118] sm:$0xff]
        %v308 = vld [vmem:[#allocation4 + $0x120] sm:$0xff]
        %v309 = vld [vmem:[#allocation4 + $0x128] sm:$0xff]
        %v310 = vld [vmem:[#allocation4 + $0x130] sm:$0xff]
        %v311 = vld [vmem:[#allocation4 + $0x138] sm:$0xff]
        %v312 = vld [vmem:[#allocation4 + $0x140] sm:$0xff]
        %v313 = vld [vmem:[#allocation4 + $0x148] sm:$0xff]
        %vm314 = vcmask 392192
        %v316 = vsel %vm314, %v270, 0
        %v319 = vsel %vm314, %v271, 0
        %321 = vmatprep.subr.mxu0 %v273
        %322 = vmatpush1.msra.mxu0 %v272
        %323 = vmatprep.subr.mxu0 %v280
        %324 = vmatpush1.msra.mxu0 %v279
        %325 = vmatprep.subr.mxu0 %v287
        %326 = vmatpush1.msra.mxu0 %v286
        %327 = vmatprep.subr.mxu0 %v294
        %328 = vmatpush1.msra.mxu0 %v293
        %329 = vmatprep.subr.mxu0 %v301
        %330 = vmatpush1.msra.mxu0 %v300
        %331 = vmatprep.subr.mxu0 %v308
        %332 = vmatpush1.msra.mxu0 %v307
        %333 = vmatprep.subr.mxu0 0.0
        %334 = vmatpush1.msra.mxu0 0.0
        %335 = vmatprep.subr.mxu0 0.0
        %336 = vmatpush1.msra.mxu0 0.0
        %337 = vmatprep.subr.mxu0 0.0
        %338 = vmatpush1.msra.mxu0 0.0
        %339 = vmatprep.subr.mxu0 0.0
        %340 = vmatpush1.msra.mxu0 0.0
        %341 = vmatprep.subr.mxu0 0.0
        %342 = vmatpush1.msra.mxu0 0.0
        %343 = vmatprep.subr.mxu0 0.0
        %344 = vmatpush1.msra.mxu0 0.0
        %345 = vmatprep.subr.mxu0 0.0
        %346 = vmatpush1.msra.mxu0 0.0
        %347 = vmatprep.subr.mxu0 0.0
        %348 = vmatpush1.msra.mxu0 0.0
        %349 = vmatprep.subr.mxu0 0.0
        %350 = vmatpush1.msra.mxu0 0.0
        %351 = vmatprep.subr.mxu0 0.0
        %352 = vmatpush1.msra.mxu0 0.0
        %353 = vmatprep.subr.mxu0 0.0
        %354 = vmatpush1.msra.mxu0 0.0
        %355 = vmatprep.subr.mxu0 0.0
        %356 = vmatpush1.msra.mxu0 0.0
        %357 = vmatprep.subr.mxu0 0.0
        %358 = vmatpush1.msra.mxu0 0.0
        %359 = vmatprep.subr.mxu0 0.0
        %360 = vmatpush1.msra.mxu0 0.0
        %361 = vmatprep.subr.mxu0 0.0
        %362 = vmatpush1.msra.mxu0 0.0
        %363 = vmatprep.subr.mxu0 0.0
        %364 = vmatpush1.msra.mxu0 0.0
        %365 = vmatprep.subr.mxu0 0.0
        %366 = vmatpush1.msra.mxu0 0.0
        %367 = vmatprep.subr.mxu0 0.0
        %368 = vmatpush1.msra.mxu0 0.0
        %369 = vmatprep.subr.mxu0 0.0
        %370 = vmatpush1.msra.mxu0 0.0
        %371 = vmatprep.subr.mxu0 0.0
        %372 = vmatpush1.msra.mxu0 0.0
        %373 = vmatprep.subr.mxu0 0.0
        %374 = vmatpush1.msra.mxu0 0.0
        %375 = vmatprep.subr.mxu0 0.0
        %376 = vmatpush1.msra.mxu0 0.0
        %377 = vmatprep.subr.mxu0 0.0
        %378 = vmatpush1.msra.mxu0 0.0
        %379 = vmatprep.subr.mxu0 0.0
        %380 = vmatpush1.msra.mxu0 0.0
        %381 = vmatprep.subr.mxu0 0.0
        %382 = vmatpush1.msra.mxu0 0.0
        %383 = vmatprep.subr.mxu0 0.0
        %384 = vmatpush1.msra.mxu0 0.0
        %385 = vmatprep.mubr.f32.mxu0 0.0
        %386 = vmatmul.mubr.f32.gmra.mrb[0].mxu0 %v316
        %v387 = vpop.f32.mrb[0].mxu0
        %v388 = vadd.f32 0.0, %v387
        %v389 = vpop.f32.mrb[0].mxu0
        %v390 = vadd.f32 0.0, %v389
        %391 = vmatprep.mubr.f32.mxu0 0.0
        %392 = vmatmul.mubr.f32.gmra.mrb[0].mxu0 %v319
        %v393 = vpop.f32.mrb[0].mxu0
        %v394 = vadd.f32 0.0, %v393
        %v395 = vpop.f32.mrb[0].mxu0
        %v396 = vadd.f32 0.0, %v395
        %397 = vdwg.mxu0
        %398 = vmatprep.subr.mxu0 %v275
        %399 = vmatpush1.msra.mxu0 %v274
        %400 = vmatprep.subr.mxu0 %v282
        %401 = vmatpush1.msra.mxu0 %v281
        %402 = vmatprep.subr.mxu0 %v289
        %403 = vmatpush1.msra.mxu0 %v288
        %404 = vmatprep.subr.mxu0 %v296
        %405 = vmatpush1.msra.mxu0 %v295
        %406 = vmatprep.subr.mxu0 %v303
        %407 = vmatpush1.msra.mxu0 %v302
        %408 = vmatprep.subr.mxu0 %v310
        %409 = vmatpush1.msra.mxu0 %v309
        %410 = vmatprep.subr.mxu0 0.0
        %411 = vmatpush1.msra.mxu0 0.0
        %412 = vmatprep.subr.mxu0 0.0
        %413 = vmatpush1.msra.mxu0 0.0
        %414 = vmatprep.subr.mxu0 0.0
        %415 = vmatpush1.msra.mxu0 0.0
        %416 = vmatprep.subr.mxu0 0.0
        %417 = vmatpush1.msra.mxu0 0.0
        %418 = vmatprep.subr.mxu0 0.0
        %419 = vmatpush1.msra.mxu0 0.0
        %420 = vmatprep.subr.mxu0 0.0
        %421 = vmatpush1.msra.mxu0 0.0
        %422 = vmatprep.subr.mxu0 0.0
        %423 = vmatpush1.msra.mxu0 0.0
        %424 = vmatprep.subr.mxu0 0.0
        %425 = vmatpush1.msra.mxu0 0.0
        %426 = vmatprep.subr.mxu0 0.0
        %427 = vmatpush1.msra.mxu0 0.0
        %428 = vmatprep.subr.mxu0 0.0
        %429 = vmatpush1.msra.mxu0 0.0
        %430 = vmatprep.subr.mxu0 0.0
        %431 = vmatpush1.msra.mxu0 0.0
        %432 = vmatprep.subr.mxu0 0.0
        %433 = vmatpush1.msra.mxu0 0.0
        %434 = vmatprep.subr.mxu0 0.0
        %435 = vmatpush1.msra.mxu0 0.0
        %436 = vmatprep.subr.mxu0 0.0
        %437 = vmatpush1.msra.mxu0 0.0
        %438 = vmatprep.subr.mxu0 0.0
        %439 = vmatpush1.msra.mxu0 0.0
        %440 = vmatprep.subr.mxu0 0.0
        %441 = vmatpush1.msra.mxu0 0.0
        %442 = vmatprep.subr.mxu0 0.0
        %443 = vmatpush1.msra.mxu0 0.0
        %444 = vmatprep.subr.mxu0 0.0
        %445 = vmatpush1.msra.mxu0 0.0
        %446 = vmatprep.subr.mxu0 0.0
        %447 = vmatpush1.msra.mxu0 0.0
        %448 = vmatprep.subr.mxu0 0.0
        %449 = vmatpush1.msra.mxu0 0.0
        %450 = vmatprep.subr.mxu0 0.0
        %451 = vmatpush1.msra.mxu0 0.0
        %452 = vmatprep.subr.mxu0 0.0
        %453 = vmatpush1.msra.mxu0 0.0
        %454 = vmatprep.subr.mxu0 0.0
        %455 = vmatpush1.msra.mxu0 0.0
        %456 = vmatprep.subr.mxu0 0.0
        %457 = vmatpush1.msra.mxu0 0.0
        %458 = vmatprep.subr.mxu0 0.0
        %459 = vmatpush1.msra.mxu0 0.0
        %460 = vmatprep.subr.mxu0 0.0
        %461 = vmatpush1.msra.mxu0 0.0
        %462 = vmatprep.mubr.f32.mxu0 0.0
        %463 = vmatmul.mubr.f32.gmra.mrb[0].mxu0 %v316
        %v464 = vpop.f32.mrb[0].mxu0
        %v465 = vadd.f32 0.0, %v464
        %v466 = vpop.f32.mrb[0].mxu0
        %v467 = vadd.f32 0.0, %v466
        %468 = vmatprep.mubr.f32.mxu0 0.0
        %469 = vmatmul.mubr.f32.gmra.mrb[0].mxu0 %v319
        %v470 = vpop.f32.mrb[0].mxu0
        %v471 = vadd.f32 0.0, %v470
        %v472 = vpop.f32.mrb[0].mxu0
        %v473 = vadd.f32 0.0, %v472
        %474 = vdwg.mxu0
        %475 = vmatprep.subr.mxu0 %v277
        %476 = vmatpush1.msra.mxu0 %v276
        %477 = vmatprep.subr.mxu0 %v284
        %478 = vmatpush1.msra.mxu0 %v283
        %479 = vmatprep.subr.mxu0 %v291
        %480 = vmatpush1.msra.mxu0 %v290
        %481 = vmatprep.subr.mxu0 %v298
        %482 = vmatpush1.msra.mxu0 %v297
        %483 = vmatprep.subr.mxu0 %v305
        %484 = vmatpush1.msra.mxu0 %v304
        %485 = vmatprep.subr.mxu0 %v312
        %486 = vmatpush1.msra.mxu0 %v311
        %487 = vmatprep.subr.mxu0 0.0
        %488 = vmatpush1.msra.mxu0 0.0
        %489 = vmatprep.subr.mxu0 0.0
        %490 = vmatpush1.msra.mxu0 0.0
        %491 = vmatprep.subr.mxu0 0.0
        %492 = vmatpush1.msra.mxu0 0.0
        %493 = vmatprep.subr.mxu0 0.0
        %494 = vmatpush1.msra.mxu0 0.0
        %495 = vmatprep.subr.mxu0 0.0
        %496 = vmatpush1.msra.mxu0 0.0
        %497 = vmatprep.subr.mxu0 0.0
        %498 = vmatpush1.msra.mxu0 0.0
        %499 = vmatprep.subr.mxu0 0.0
        %500 = vmatpush1.msra.mxu0 0.0
        %501 = vmatprep.subr.mxu0 0.0
        %502 = vmatpush1.msra.mxu0 0.0
        %503 = vmatprep.subr.mxu0 0.0
        %504 = vmatpush1.msra.mxu0 0.0
        %505 = vmatprep.subr.mxu0 0.0
        %506 = vmatpush1.msra.mxu0 0.0
        %507 = vmatprep.subr.mxu0 0.0
        %508 = vmatpush1.msra.mxu0 0.0
        %509 = vmatprep.subr.mxu0 0.0
        %510 = vmatpush1.msra.mxu0 0.0
        %511 = vmatprep.subr.mxu0 0.0
        %512 = vmatpush1.msra.mxu0 0.0
        %513 = vmatprep.subr.mxu0 0.0
        %514 = vmatpush1.msra.mxu0 0.0
        %515 = vmatprep.subr.mxu0 0.0
        %516 = vmatpush1.msra.mxu0 0.0
        %517 = vmatprep.subr.mxu0 0.0
        %518 = vmatpush1.msra.mxu0 0.0
        %519 = vmatprep.subr.mxu0 0.0
        %520 = vmatpush1.msra.mxu0 0.0
        %521 = vmatprep.subr.mxu0 0.0
        %522 = vmatpush1.msra.mxu0 0.0
        %523 = vmatprep.subr.mxu0 0.0
        %524 = vmatpush1.msra.mxu0 0.0
        %525 = vmatprep.subr.mxu0 0.0
        %526 = vmatpush1.msra.mxu0 0.0
        %527 = vmatprep.subr.mxu0 0.0
        %528 = vmatpush1.msra.mxu0 0.0
        %529 = vmatprep.subr.mxu0 0.0
        %530 = vmatpush1.msra.mxu0 0.0
        %531 = vmatprep.subr.mxu0 0.0
        %532 = vmatpush1.msra.mxu0 0.0
        %533 = vmatprep.subr.mxu0 0.0
        %534 = vmatpush1.msra.mxu0 0.0
        %535 = vmatprep.subr.mxu0 0.0
        %536 = vmatpush1.msra.mxu0 0.0
        %537 = vmatprep.subr.mxu0 0.0
        %538 = vmatpush1.msra.mxu0 0.0
        %539 = vmatprep.mubr.f32.mxu0 0.0
        %540 = vmatmul.mubr.f32.gmra.mrb[0].mxu0 %v316
        %v541 = vpop.f32.mrb[0].mxu0
        %v542 = vadd.f32 0.0, %v541
        %v543 = vpop.f32.mrb[0].mxu0
        %v544 = vadd.f32 0.0, %v543
        %545 = vmatprep.mubr.f32.mxu0 0.0
        %546 = vmatmul.mubr.f32.gmra.mrb[0].mxu0 %v319
        %v547 = vpop.f32.mrb[0].mxu0
        %v548 = vadd.f32 0.0, %v547
        %v549 = vpop.f32.mrb[0].mxu0
        %v550 = vadd.f32 0.0, %v549
        %551 = vdwg.mxu0
        %552 = vmatprep.subr.mxu0 0.0
        %553 = vmatpush1.msra.mxu0 %v278
        %554 = vmatprep.subr.mxu0 0.0
        %555 = vmatpush1.msra.mxu0 %v285
        %556 = vmatprep.subr.mxu0 0.0
        %557 = vmatpush1.msra.mxu0 %v292
        %558 = vmatprep.subr.mxu0 0.0
        %559 = vmatpush1.msra.mxu0 %v299
        %560 = vmatprep.subr.mxu0 0.0
        %561 = vmatpush1.msra.mxu0 %v306
        %562 = vmatprep.subr.mxu0 0.0
        %563 = vmatpush1.msra.mxu0 %v313
        %564 = vmatprep.subr.mxu0 0.0
        %565 = vmatpush1.msra.mxu0 0.0
        %566 = vmatprep.subr.mxu0 0.0
        %567 = vmatpush1.msra.mxu0 0.0
        %568 = vmatprep.subr.mxu0 0.0
        %569 = vmatpush1.msra.mxu0 0.0
        %570 = vmatprep.subr.mxu0 0.0
        %571 = vmatpush1.msra.mxu0 0.0
        %572 = vmatprep.subr.mxu0 0.0
        %573 = vmatpush1.msra.mxu0 0.0
        %574 = vmatprep.subr.mxu0 0.0
        %575 = vmatpush1.msra.mxu0 0.0
        %576 = vmatprep.subr.mxu0 0.0
        %577 = vmatpush1.msra.mxu0 0.0
        %578 = vmatprep.subr.mxu0 0.0
        %579 = vmatpush1.msra.mxu0 0.0
        %580 = vmatprep.subr.mxu0 0.0
        %581 = vmatpush1.msra.mxu0 0.0
        %582 = vmatprep.subr.mxu0 0.0
        %583 = vmatpush1.msra.mxu0 0.0
        %584 = vmatprep.subr.mxu0 0.0
        %585 = vmatpush1.msra.mxu0 0.0
        %586 = vmatprep.subr.mxu0 0.0
        %587 = vmatpush1.msra.mxu0 0.0
        %588 = vmatprep.subr.mxu0 0.0
        %589 = vmatpush1.msra.mxu0 0.0
        %590 = vmatprep.subr.mxu0 0.0
        %591 = vmatpush1.msra.mxu0 0.0
        %592 = vmatprep.subr.mxu0 0.0
        %593 = vmatpush1.msra.mxu0 0.0
        %594 = vmatprep.subr.mxu0 0.0
        %595 = vmatpush1.msra.mxu0 0.0
        %596 = vmatprep.subr.mxu0 0.0
        %597 = vmatpush1.msra.mxu0 0.0
        %598 = vmatprep.subr.mxu0 0.0
        %599 = vmatpush1.msra.mxu0 0.0
        %600 = vmatprep.subr.mxu0 0.0
        %601 = vmatpush1.msra.mxu0 0.0
        %602 = vmatprep.subr.mxu0 0.0
        %603 = vmatpush1.msra.mxu0 0.0
        %604 = vmatprep.subr.mxu0 0.0
        %605 = vmatpush1.msra.mxu0 0.0
        %606 = vmatprep.subr.mxu0 0.0
        %607 = vmatpush1.msra.mxu0 0.0
        %608 = vmatprep.subr.mxu0 0.0
        %609 = vmatpush1.msra.mxu0 0.0
        %610 = vmatprep.subr.mxu0 0.0
        %611 = vmatpush1.msra.mxu0 0.0
        %612 = vmatprep.subr.mxu0 0.0
        %613 = vmatpush1.msra.mxu0 0.0
        %614 = vmatprep.subr.mxu0 0.0
        %615 = vmatpush1.msra.mxu0 0.0
        %616 = vmatprep.mubr.f32.mxu0 0.0
        %617 = vmatmul.mubr.f32.gmra.mrb[0].mxu0 %v316
        %v618 = vpop.f32.mrb[0].mxu0
        %v619 = vadd.f32 0.0, %v618
        %v620 = vpop.f32.mrb[0].mxu0
        %621 = vmatprep.mubr.f32.mxu0 0.0
        %622 = vmatmul.mubr.f32.gmra.mrb[0].mxu0 %v319
        %v623 = vpop.f32.mrb[0].mxu0
        %v624 = vadd.f32 0.0, %v623
        %v625 = vpop.f32.mrb[0].mxu0
        %626 = vdwg.mxu0
        %v627 = vadd.f32 %v237, %v388
        %v628 = vadd.f32 %v241, %v390
        %v629 = vadd.f32 %v245, %v465
        %v630 = vadd.f32 %v249, %v467
        %v631 = vadd.f32 %v253, %v542
        %v632 = vadd.f32 %v257, %v544
        %v633 = vadd.f32 %v261, %v619
        %v634 = vadd.f32 %v237, %v394
        %v635 = vadd.f32 %v241, %v396
        %v636 = vadd.f32 %v245, %v471
        %v637 = vadd.f32 %v249, %v473
        %v638 = vadd.f32 %v253, %v548
        %v639 = vadd.f32 %v257, %v550
        %v640 = vadd.f32 %v261, %v624
        %s641 = sadd.s32 %s231, 1
        %s642 = scalar_lea.vmem %s188, %s641 [#allocation2]
        %v643 = vld [vmem:[%s642] sm:$0xff]
        %v644 = vld [vmem:[%s642 + $0x8] sm:$0x3f]
        %s645 = scalar_lea.vmem [#allocation4], 336
        %v646 = vld [vmem:[%s645] sm:$0xff]
        %v647 = vld [vmem:[%s645 + $0x8] sm:$0xff]
        %v648 = vld [vmem:[%s645 + $0x10] sm:$0xff]
        %v649 = vld [vmem:[%s645 + $0x18] sm:$0xff]
        %v650 = vld [vmem:[%s645 + $0x20] sm:$0xff]
        %v651 = vld [vmem:[%s645 + $0x28] sm:$0xff]
        %v652 = vld [vmem:[%s645 + $0x30] sm:$0xff]
        %v653 = vld [vmem:[%s645 + $0x38] sm:$0xff]
        %v654 = vld [vmem:[%s645 + $0x40] sm:$0xff]
        %v655 = vld [vmem:[%s645 + $0x48] sm:$0xff]
        %v656 = vld [vmem:[%s645 + $0x50] sm:$0xff]
        %v657 = vld [vmem:[%s645 + $0x58] sm:$0xff]
        %v658 = vld [vmem:[%s645 + $0x60] sm:$0xff]
        %v659 = vld [vmem:[%s645 + $0x68] sm:$0xff]
        %v660 = vld [vmem:[%s645 + $0x70] sm:$0xff]
        %v661 = vld [vmem:[%s645 + $0x78] sm:$0xff]
        %v662 = vld [vmem:[%s645 + $0x80] sm:$0xff]
        %v663 = vld [vmem:[%s645 + $0x88] sm:$0xff]
        %v664 = vld [vmem:[%s645 + $0x90] sm:$0xff]
        %v665 = vld [vmem:[%s645 + $0x98] sm:$0xff]
        %v666 = vld [vmem:[%s645 + $0xa0] sm:$0xff]
        %v667 = vld [vmem:[%s645 + $0xa8] sm:$0xff]
        %v668 = vld [vmem:[%s645 + $0xb0] sm:$0xff]
        %v669 = vld [vmem:[%s645 + $0xb8] sm:$0xff]
        %v670 = vld [vmem:[%s645 + $0xc0] sm:$0xff]
        %v671 = vld [vmem:[%s645 + $0xc8] sm:$0xff]
        %v672 = vld [vmem:[%s645 + $0xd0] sm:$0xff]
        %v673 = vld [vmem:[%s645 + $0xd8] sm:$0xff]
        %v674 = vld [vmem:[%s645 + $0xe0] sm:$0xff]
        %v675 = vld [vmem:[%s645 + $0xe8] sm:$0xff]
        %v676 = vld [vmem:[%s645 + $0xf0] sm:$0xff]
        %v677 = vld [vmem:[%s645 + $0xf8] sm:$0xff]
        %v678 = vld [vmem:[%s645 + $0x100] sm:$0xff]
        %v679 = vld [vmem:[%s645 + $0x108] sm:$0xff]
        %v680 = vld [vmem:[%s645 + $0x110] sm:$0xff]
        %v681 = vld [vmem:[%s645 + $0x118] sm:$0xff]
        %v682 = vld [vmem:[%s645 + $0x120] sm:$0xff]
        %v683 = vld [vmem:[%s645 + $0x128] sm:$0xff]
        %v684 = vld [vmem:[%s645 + $0x130] sm:$0xff]
        %v685 = vld [vmem:[%s645 + $0x138] sm:$0xff]
        %v686 = vld [vmem:[%s645 + $0x140] sm:$0xff]
        %v687 = vld [vmem:[%s645 + $0x148] sm:$0xff]
        %v689 = vsel %vm314, %v643, 0
        %v692 = vsel %vm314, %v644, 0
        %694 = vmatprep.subr.mxu0 %v647
        %695 = vmatpush1.msra.mxu0 %v646
        %696 = vmatprep.subr.mxu0 %v654
        %697 = vmatpush1.msra.mxu0 %v653
        %698 = vmatprep.subr.mxu0 %v661
        %699 = vmatpush1.msra.mxu0 %v660
        %700 = vmatprep.subr.mxu0 %v668
        %701 = vmatpush1.msra.mxu0 %v667
        %702 = vmatprep.subr.mxu0 %v675
        %703 = vmatpush1.msra.mxu0 %v674
        %704 = vmatprep.subr.mxu0 %v682
        %705 = vmatpush1.msra.mxu0 %v681
        %706 = vmatprep.subr.mxu0 0.0
        %707 = vmatpush1.msra.mxu0 0.0
        %708 = vmatprep.subr.mxu0 0.0
        %709 = vmatpush1.msra.mxu0 0.0
        %710 = vmatprep.subr.mxu0 0.0
        %711 = vmatpush1.msra.mxu0 0.0
        %712 = vmatprep.subr.mxu0 0.0
        %713 = vmatpush1.msra.mxu0 0.0
        %714 = vmatprep.subr.mxu0 0.0
        %715 = vmatpush1.msra.mxu0 0.0
        %716 = vmatprep.subr.mxu0 0.0
        %717 = vmatpush1.msra.mxu0 0.0
        %718 = vmatprep.subr.mxu0 0.0
        %719 = vmatpush1.msra.mxu0 0.0
        %720 = vmatprep.subr.mxu0 0.0
        %721 = vmatpush1.msra.mxu0 0.0
        %722 = vmatprep.subr.mxu0 0.0
        %723 = vmatpush1.msra.mxu0 0.0
        %724 = vmatprep.subr.mxu0 0.0
        %725 = vmatpush1.msra.mxu0 0.0
        %726 = vmatprep.subr.mxu0 0.0
        %727 = vmatpush1.msra.mxu0 0.0
        %728 = vmatprep.subr.mxu0 0.0
        %729 = vmatpush1.msra.mxu0 0.0
        %730 = vmatprep.subr.mxu0 0.0
        %731 = vmatpush1.msra.mxu0 0.0
        %732 = vmatprep.subr.mxu0 0.0
        %733 = vmatpush1.msra.mxu0 0.0
        %734 = vmatprep.subr.mxu0 0.0
        %735 = vmatpush1.msra.mxu0 0.0
        %736 = vmatprep.subr.mxu0 0.0
        %737 = vmatpush1.msra.mxu0 0.0
        %738 = vmatprep.subr.mxu0 0.0
        %739 = vmatpush1.msra.mxu0 0.0
        %740 = vmatprep.subr.mxu0 0.0
        %741 = vmatpush1.msra.mxu0 0.0
        %742 = vmatprep.subr.mxu0 0.0
        %743 = vmatpush1.msra.mxu0 0.0
        %744 = vmatprep.subr.mxu0 0.0
        %745 = vmatpush1.msra.mxu0 0.0
        %746 = vmatprep.subr.mxu0 0.0
        %747 = vmatpush1.msra.mxu0 0.0
        %748 = vmatprep.subr.mxu0 0.0
        %749 = vmatpush1.msra.mxu0 0.0
        %750 = vmatprep.subr.mxu0 0.0
        %751 = vmatpush1.msra.mxu0 0.0
        %752 = vmatprep.subr.mxu0 0.0
        %753 = vmatpush1.msra.mxu0 0.0
        %754 = vmatprep.subr.mxu0 0.0
        %755 = vmatpush1.msra.mxu0 0.0
        %756 = vmatprep.subr.mxu0 0.0
        %757 = vmatpush1.msra.mxu0 0.0
        %758 = vmatprep.mubr.f32.mxu0 0.0
        %759 = vmatmul.mubr.f32.gmra.mrb[0].mxu0 %v689
        %v760 = vpop.f32.mrb[0].mxu0
        %v761 = vadd.f32 0.0, %v760
        %v762 = vpop.f32.mrb[0].mxu0
        %v763 = vadd.f32 0.0, %v762
        %764 = vmatprep.mubr.f32.mxu0 0.0
        %765 = vmatmul.mubr.f32.gmra.mrb[0].mxu0 %v692
        %v766 = vpop.f32.mrb[0].mxu0
        %v767 = vadd.f32 0.0, %v766
        %v768 = vpop.f32.mrb[0].mxu0
        %v769 = vadd.f32 0.0, %v768
        %770 = vdwg.mxu0
        %771 = vmatprep.subr.mxu0 %v649
        %772 = vmatpush1.msra.mxu0 %v648
        %773 = vmatprep.subr.mxu0 %v656
        %774 = vmatpush1.msra.mxu0 %v655
        %775 = vmatprep.subr.mxu0 %v663
        %776 = vmatpush1.msra.mxu0 %v662
        %777 = vmatprep.subr.mxu0 %v670
        %778 = vmatpush1.msra.mxu0 %v669
        %779 = vmatprep.subr.mxu0 %v677
        %780 = vmatpush1.msra.mxu0 %v676
        %781 = vmatprep.subr.mxu0 %v684
        %782 = vmatpush1.msra.mxu0 %v683
        %783 = vmatprep.subr.mxu0 0.0
        %784 = vmatpush1.msra.mxu0 0.0
        %785 = vmatprep.subr.mxu0 0.0
        %786 = vmatpush1.msra.mxu0 0.0
        %787 = vmatprep.subr.mxu0 0.0
        %788 = vmatpush1.msra.mxu0 0.0
        %789 = vmatprep.subr.mxu0 0.0
        %790 = vmatpush1.msra.mxu0 0.0
        %791 = vmatprep.subr.mxu0 0.0
        %792 = vmatpush1.msra.mxu0 0.0
        %793 = vmatprep.subr.mxu0 0.0
        %794 = vmatpush1.msra.mxu0 0.0
        %795 = vmatprep.subr.mxu0 0.0
        %796 = vmatpush1.msra.mxu0 0.0
        %797 = vmatprep.subr.mxu0 0.0
        %798 = vmatpush1.msra.mxu0 0.0
        %799 = vmatprep.subr.mxu0 0.0
        %800 = vmatpush1.msra.mxu0 0.0
        %801 = vmatprep.subr.mxu0 0.0
        %802 = vmatpush1.msra.mxu0 0.0
        %803 = vmatprep.subr.mxu0 0.0
        %804 = vmatpush1.msra.mxu0 0.0
        %805 = vmatprep.subr.mxu0 0.0
        %806 = vmatpush1.msra.mxu0 0.0
        %807 = vmatprep.subr.mxu0 0.0
        %808 = vmatpush1.msra.mxu0 0.0
        %809 = vmatprep.subr.mxu0 0.0
        %810 = vmatpush1.msra.mxu0 0.0
        %811 = vmatprep.subr.mxu0 0.0
        %812 = vmatpush1.msra.mxu0 0.0
        %813 = vmatprep.subr.mxu0 0.0
        %814 = vmatpush1.msra.mxu0 0.0
        %815 = vmatprep.subr.mxu0 0.0
        %816 = vmatpush1.msra.mxu0 0.0
        %817 = vmatprep.subr.mxu0 0.0
        %818 = vmatpush1.msra.mxu0 0.0
        %819 = vmatprep.subr.mxu0 0.0
        %820 = vmatpush1.msra.mxu0 0.0
        %821 = vmatprep.subr.mxu0 0.0
        %822 = vmatpush1.msra.mxu0 0.0
        %823 = vmatprep.subr.mxu0 0.0
        %824 = vmatpush1.msra.mxu0 0.0
        %825 = vmatprep.subr.mxu0 0.0
        %826 = vmatpush1.msra.mxu0 0.0
        %827 = vmatprep.subr.mxu0 0.0
        %828 = vmatpush1.msra.mxu0 0.0
        %829 = vmatprep.subr.mxu0 0.0
        %830 = vmatpush1.msra.mxu0 0.0
        %831 = vmatprep.subr.mxu0 0.0
        %832 = vmatpush1.msra.mxu0 0.0
        %833 = vmatprep.subr.mxu0 0.0
        %834 = vmatpush1.msra.mxu0 0.0
        %835 = vmatprep.mubr.f32.mxu0 0.0
        %836 = vmatmul.mubr.f32.gmra.mrb[0].mxu0 %v689
        %v837 = vpop.f32.mrb[0].mxu0
        %v838 = vadd.f32 0.0, %v837
        %v839 = vpop.f32.mrb[0].mxu0
        %v840 = vadd.f32 0.0, %v839
        %841 = vmatprep.mubr.f32.mxu0 0.0
        %842 = vmatmul.mubr.f32.gmra.mrb[0].mxu0 %v692
        %v843 = vpop.f32.mrb[0].mxu0
        %v844 = vadd.f32 0.0, %v843
        %v845 = vpop.f32.mrb[0].mxu0
        %v846 = vadd.f32 0.0, %v845
        %847 = vdwg.mxu0
        %848 = vmatprep.subr.mxu0 %v651
        %849 = vmatpush1.msra.mxu0 %v650
        %850 = vmatprep.subr.mxu0 %v658
        %851 = vmatpush1.msra.mxu0 %v657
        %852 = vmatprep.subr.mxu0 %v665
        %853 = vmatpush1.msra.mxu0 %v664
        %854 = vmatprep.subr.mxu0 %v672
        %855 = vmatpush1.msra.mxu0 %v671
        %856 = vmatprep.subr.mxu0 %v679
        %857 = vmatpush1.msra.mxu0 %v678
        %858 = vmatprep.subr.mxu0 %v686
        %859 = vmatpush1.msra.mxu0 %v685
        %860 = vmatprep.subr.mxu0 0.0
        %861 = vmatpush1.msra.mxu0 0.0
        %862 = vmatprep.subr.mxu0 0.0
        %863 = vmatpush1.msra.mxu0 0.0
        %864 = vmatprep.subr.mxu0 0.0
        %865 = vmatpush1.msra.mxu0 0.0
        %866 = vmatprep.subr.mxu0 0.0
        %867 = vmatpush1.msra.mxu0 0.0
        %868 = vmatprep.subr.mxu0 0.0
        %869 = vmatpush1.msra.mxu0 0.0
        %870 = vmatprep.subr.mxu0 0.0
        %871 = vmatpush1.msra.mxu0 0.0
        %872 = vmatprep.subr.mxu0 0.0
        %873 = vmatpush1.msra.mxu0 0.0
        %874 = vmatprep.subr.mxu0 0.0
        %875 = vmatpush1.msra.mxu0 0.0
        %876 = vmatprep.subr.mxu0 0.0
        %877 = vmatpush1.msra.mxu0 0.0
        %878 = vmatprep.subr.mxu0 0.0
        %879 = vmatpush1.msra.mxu0 0.0
        %880 = vmatprep.subr.mxu0 0.0
        %881 = vmatpush1.msra.mxu0 0.0
        %882 = vmatprep.subr.mxu0 0.0
        %883 = vmatpush1.msra.mxu0 0.0
        %884 = vmatprep.subr.mxu0 0.0
        %885 = vmatpush1.msra.mxu0 0.0
        %886 = vmatprep.subr.mxu0 0.0
        %887 = vmatpush1.msra.mxu0 0.0
        %888 = vmatprep.subr.mxu0 0.0
        %889 = vmatpush1.msra.mxu0 0.0
        %890 = vmatprep.subr.mxu0 0.0
        %891 = vmatpush1.msra.mxu0 0.0
        %892 = vmatprep.subr.mxu0 0.0
        %893 = vmatpush1.msra.mxu0 0.0
        %894 = vmatprep.subr.mxu0 0.0
        %895 = vmatpush1.msra.mxu0 0.0
        %896 = vmatprep.subr.mxu0 0.0
        %897 = vmatpush1.msra.mxu0 0.0
        %898 = vmatprep.subr.mxu0 0.0
        %899 = vmatpush1.msra.mxu0 0.0
        %900 = vmatprep.subr.mxu0 0.0
        %901 = vmatpush1.msra.mxu0 0.0
        %902 = vmatprep.subr.mxu0 0.0
        %903 = vmatpush1.msra.mxu0 0.0
        %904 = vmatprep.subr.mxu0 0.0
        %905 = vmatpush1.msra.mxu0 0.0
        %906 = vmatprep.subr.mxu0 0.0
        %907 = vmatpush1.msra.mxu0 0.0
        %908 = vmatprep.subr.mxu0 0.0
        %909 = vmatpush1.msra.mxu0 0.0
        %910 = vmatprep.subr.mxu0 0.0
        %911 = vmatpush1.msra.mxu0 0.0
        %912 = vmatprep.mubr.f32.mxu0 0.0
        %913 = vmatmul.mubr.f32.gmra.mrb[0].mxu0 %v689
        %v914 = vpop.f32.mrb[0].mxu0
        %v915 = vadd.f32 0.0, %v914
        %v916 = vpop.f32.mrb[0].mxu0
        %v917 = vadd.f32 0.0, %v916
        %918 = vmatprep.mubr.f32.mxu0 0.0
        %919 = vmatmul.mubr.f32.gmra.mrb[0].mxu0 %v692
        %v920 = vpop.f32.mrb[0].mxu0
        %v921 = vadd.f32 0.0, %v920
        %v922 = vpop.f32.mrb[0].mxu0
        %v923 = vadd.f32 0.0, %v922
        %924 = vdwg.mxu0
        %925 = vmatprep.subr.mxu0 0.0
        %926 = vmatpush1.msra.mxu0 %v652
        %927 = vmatprep.subr.mxu0 0.0
        %928 = vmatpush1.msra.mxu0 %v659
        %929 = vmatprep.subr.mxu0 0.0
        %930 = vmatpush1.msra.mxu0 %v666
        %931 = vmatprep.subr.mxu0 0.0
        %932 = vmatpush1.msra.mxu0 %v673
        %933 = vmatprep.subr.mxu0 0.0
        %934 = vmatpush1.msra.mxu0 %v680
        %935 = vmatprep.subr.mxu0 0.0
        %936 = vmatpush1.msra.mxu0 %v687
        %937 = vmatprep.subr.mxu0 0.0
        %938 = vmatpush1.msra.mxu0 0.0
        %939 = vmatprep.subr.mxu0 0.0
        %940 = vmatpush1.msra.mxu0 0.0
        %941 = vmatprep.subr.mxu0 0.0
        %942 = vmatpush1.msra.mxu0 0.0
        %943 = vmatprep.subr.mxu0 0.0
        %944 = vmatpush1.msra.mxu0 0.0
        %945 = vmatprep.subr.mxu0 0.0
        %946 = vmatpush1.msra.mxu0 0.0
        %947 = vmatprep.subr.mxu0 0.0
        %948 = vmatpush1.msra.mxu0 0.0
        %949 = vmatprep.subr.mxu0 0.0
        %950 = vmatpush1.msra.mxu0 0.0
        %951 = vmatprep.subr.mxu0 0.0
        %952 = vmatpush1.msra.mxu0 0.0
        %953 = vmatprep.subr.mxu0 0.0
        %954 = vmatpush1.msra.mxu0 0.0
        %955 = vmatprep.subr.mxu0 0.0
        %956 = vmatpush1.msra.mxu0 0.0
        %957 = vmatprep.subr.mxu0 0.0
        %958 = vmatpush1.msra.mxu0 0.0
        %959 = vmatprep.subr.mxu0 0.0
        %960 = vmatpush1.msra.mxu0 0.0
        %961 = vmatprep.subr.mxu0 0.0
        %962 = vmatpush1.msra.mxu0 0.0
        %963 = vmatprep.subr.mxu0 0.0
        %964 = vmatpush1.msra.mxu0 0.0
        %965 = vmatprep.subr.mxu0 0.0
        %966 = vmatpush1.msra.mxu0 0.0
        %967 = vmatprep.subr.mxu0 0.0
        %968 = vmatpush1.msra.mxu0 0.0
        %969 = vmatprep.subr.mxu0 0.0
        %970 = vmatpush1.msra.mxu0 0.0
        %971 = vmatprep.subr.mxu0 0.0
        %972 = vmatpush1.msra.mxu0 0.0
        %973 = vmatprep.subr.mxu0 0.0
        %974 = vmatpush1.msra.mxu0 0.0
        %975 = vmatprep.subr.mxu0 0.0
        %976 = vmatpush1.msra.mxu0 0.0
        %977 = vmatprep.subr.mxu0 0.0
        %978 = vmatpush1.msra.mxu0 0.0
        %979 = vmatprep.subr.mxu0 0.0
        %980 = vmatpush1.msra.mxu0 0.0
        %981 = vmatprep.subr.mxu0 0.0
        %982 = vmatpush1.msra.mxu0 0.0
        %983 = vmatprep.subr.mxu0 0.0
        %984 = vmatpush1.msra.mxu0 0.0
        %985 = vmatprep.subr.mxu0 0.0
        %986 = vmatpush1.msra.mxu0 0.0
        %987 = vmatprep.subr.mxu0 0.0
        %988 = vmatpush1.msra.mxu0 0.0
        %989 = vmatprep.mubr.f32.mxu0 0.0
        %990 = vmatmul.mubr.f32.gmra.mrb[0].mxu0 %v689
        %v991 = vpop.f32.mrb[0].mxu0
        %v992 = vadd.f32 0.0, %v991
        %v993 = vpop.f32.mrb[0].mxu0
        %994 = vmatprep.mubr.f32.mxu0 0.0
        %995 = vmatmul.mubr.f32.gmra.mrb[0].mxu0 %v692
        %v996 = vpop.f32.mrb[0].mxu0
        %v997 = vadd.f32 0.0, %v996
        %v998 = vpop.f32.mrb[0].mxu0
        %999 = vdwg.mxu0
        %v1000 = vadd.f32 %v627, %v761
        %v1001 = vadd.f32 %v628, %v763
        %v1002 = vadd.f32 %v629, %v838
        %v1003 = vadd.f32 %v630, %v840
        %v1004 = vadd.f32 %v631, %v915
        %v1005 = vadd.f32 %v632, %v917
        %v1006 = vadd.f32 %v633, %v992
        %v1007 = vadd.f32 %v634, %v767
        %v1008 = vadd.f32 %v635, %v769
        %v1009 = vadd.f32 %v636, %v844
        %v1010 = vadd.f32 %v637, %v846
        %v1011 = vadd.f32 %v638, %v921
        %v1012 = vadd.f32 %v639, %v923
        %v1013 = vadd.f32 %v640, %v997
        %s1014 = sadd.s32 %s231, 2
        %s1015 = scalar_lea.vmem %s188, %s1014 [#allocation2]
        %v1016 = vld [vmem:[%s1015] sm:$0xff]
        %v1017 = vld [vmem:[%s1015 + $0x8] sm:$0x3f]
        %s1018 = scalar_lea.vmem [#allocation4], 672
        %v1019 = vld [vmem:[%s1018] sm:$0xff]
        %v1020 = vld [vmem:[%s1018 + $0x8] sm:$0xff]
        %v1021 = vld [vmem:[%s1018 + $0x10] sm:$0xff]
        %v1022 = vld [vmem:[%s1018 + $0x18] sm:$0xff]
        %v1023 = vld [vmem:[%s1018 + $0x20] sm:$0xff]
        %v1024 = vld [vmem:[%s1018 + $0x28] sm:$0xff]
        %v1025 = vld [vmem:[%s1018 + $0x30] sm:$0xff]
        %v1026 = vld [vmem:[%s1018 + $0x38] sm:$0xff]
        %v1027 = vld [vmem:[%s1018 + $0x40] sm:$0xff]
        %v1028 = vld [vmem:[%s1018 + $0x48] sm:$0xff]
        %v1029 = vld [vmem:[%s1018 + $0x50] sm:$0xff]
        %v1030 = vld [vmem:[%s1018 + $0x58] sm:$0xff]
        %v1031 = vld [vmem:[%s1018 + $0x60] sm:$0xff]
        %v1032 = vld [vmem:[%s1018 + $0x68] sm:$0xff]
        %v1033 = vld [vmem:[%s1018 + $0x70] sm:$0xff]
        %v1034 = vld [vmem:[%s1018 + $0x78] sm:$0xff]
        %v1035 = vld [vmem:[%s1018 + $0x80] sm:$0xff]
        %v1036 = vld [vmem:[%s1018 + $0x88] sm:$0xff]
        %v1037 = vld [vmem:[%s1018 + $0x90] sm:$0xff]
        %v1038 = vld [vmem:[%s1018 + $0x98] sm:$0xff]
        %v1039 = vld [vmem:[%s1018 + $0xa0] sm:$0xff]
        %v1040 = vld [vmem:[%s1018 + $0xa8] sm:$0xff]
        %v1041 = vld [vmem:[%s1018 + $0xb0] sm:$0xff]
        %v1042 = vld [vmem:[%s1018 + $0xb8] sm:$0xff]
        %v1043 = vld [vmem:[%s1018 + $0xc0] sm:$0xff]
        %v1044 = vld [vmem:[%s1018 + $0xc8] sm:$0xff]
        %v1045 = vld [vmem:[%s1018 + $0xd0] sm:$0xff]
        %v1046 = vld [vmem:[%s1018 + $0xd8] sm:$0xff]
        %v1047 = vld [vmem:[%s1018 + $0xe0] sm:$0xff]
        %v1048 = vld [vmem:[%s1018 + $0xe8] sm:$0xff]
        %v1049 = vld [vmem:[%s1018 + $0xf0] sm:$0xff]
        %v1050 = vld [vmem:[%s1018 + $0xf8] sm:$0xff]
        %v1051 = vld [vmem:[%s1018 + $0x100] sm:$0xff]
        %v1052 = vld [vmem:[%s1018 + $0x108] sm:$0xff]
        %v1053 = vld [vmem:[%s1018 + $0x110] sm:$0xff]
        %v1054 = vld [vmem:[%s1018 + $0x118] sm:$0xff]
        %v1055 = vld [vmem:[%s1018 + $0x120] sm:$0xff]
        %v1056 = vld [vmem:[%s1018 + $0x128] sm:$0xff]
        %v1057 = vld [vmem:[%s1018 + $0x130] sm:$0xff]
        %v1058 = vld [vmem:[%s1018 + $0x138] sm:$0xff]
        %v1059 = vld [vmem:[%s1018 + $0x140] sm:$0xff]
        %v1060 = vld [vmem:[%s1018 + $0x148] sm:$0xff]
        %v1062 = vsel %vm314, %v1016, 0
        %v1065 = vsel %vm314, %v1017, 0
        %1067 = vmatprep.subr.mxu0 %v1020
        %1068 = vmatpush1.msra.mxu0 %v1019
        %1069 = vmatprep.subr.mxu0 %v1027
        %1070 = vmatpush1.msra.mxu0 %v1026
        %1071 = vmatprep.subr.mxu0 %v1034
        %1072 = vmatpush1.msra.mxu0 %v1033
        %1073 = vmatprep.subr.mxu0 %v1041
        %1074 = vmatpush1.msra.mxu0 %v1040
        %1075 = vmatprep.subr.mxu0 %v1048
        %1076 = vmatpush1.msra.mxu0 %v1047
        %1077 = vmatprep.subr.mxu0 %v1055
        %1078 = vmatpush1.msra.mxu0 %v1054
        %1079 = vmatprep.subr.mxu0 0.0
        %1080 = vmatpush1.msra.mxu0 0.0
        %1081 = vmatprep.subr.mxu0 0.0
        %1082 = vmatpush1.msra.mxu0 0.0
        %1083 = vmatprep.subr.mxu0 0.0
        %1084 = vmatpush1.msra.mxu0 0.0
        %1085 = vmatprep.subr.mxu0 0.0
        %1086 = vmatpush1.msra.mxu0 0.0
        %1087 = vmatprep.subr.mxu0 0.0
        %1088 = vmatpush1.msra.mxu0 0.0
        %1089 = vmatprep.subr.mxu0 0.0
        %1090 = vmatpush1.msra.mxu0 0.0
        %1091 = vmatprep.subr.mxu0 0.0
        %1092 = vmatpush1.msra.mxu0 0.0
        %1093 = vmatprep.subr.mxu0 0.0
        %1094 = vmatpush1.msra.mxu0 0.0
        %1095 = vmatprep.subr.mxu0 0.0
        %1096 = vmatpush1.msra.mxu0 0.0
        %1097 = vmatprep.subr.mxu0 0.0
        %1098 = vmatpush1.msra.mxu0 0.0
        %1099 = vmatprep.subr.mxu0 0.0
        %1100 = vmatpush1.msra.mxu0 0.0
        %1101 = vmatprep.subr.mxu0 0.0
        %1102 = vmatpush1.msra.mxu0 0.0
        %1103 = vmatprep.subr.mxu0 0.0
        %1104 = vmatpush1.msra.mxu0 0.0
        %1105 = vmatprep.subr.mxu0 0.0
        %1106 = vmatpush1.msra.mxu0 0.0
        %1107 = vmatprep.subr.mxu0 0.0
        %1108 = vmatpush1.msra.mxu0 0.0
        %1109 = vmatprep.subr.mxu0 0.0
        %1110 = vmatpush1.msra.mxu0 0.0
        %1111 = vmatprep.subr.mxu0 0.0
        %1112 = vmatpush1.msra.mxu0 0.0
        %1113 = vmatprep.subr.mxu0 0.0
        %1114 = vmatpush1.msra.mxu0 0.0
        %1115 = vmatprep.subr.mxu0 0.0
        %1116 = vmatpush1.msra.mxu0 0.0
        %1117 = vmatprep.subr.mxu0 0.0
        %1118 = vmatpush1.msra.mxu0 0.0
        %1119 = vmatprep.subr.mxu0 0.0
        %1120 = vmatpush1.msra.mxu0 0.0
        %1121 = vmatprep.subr.mxu0 0.0
        %1122 = vmatpush1.msra.mxu0 0.0
        %1123 = vmatprep.subr.mxu0 0.0
        %1124 = vmatpush1.msra.mxu0 0.0
        %1125 = vmatprep.subr.mxu0 0.0
        %1126 = vmatpush1.msra.mxu0 0.0
        %1127 = vmatprep.subr.mxu0 0.0
        %1128 = vmatpush1.msra.mxu0 0.0
        %1129 = vmatprep.subr.mxu0 0.0
        %1130 = vmatpush1.msra.mxu0 0.0
        %1131 = vmatprep.mubr.f32.mxu0 0.0
        %1132 = vmatmul.mubr.f32.gmra.mrb[0].mxu0 %v1062
        %v1133 = vpop.f32.mrb[0].mxu0
        %v1134 = vadd.f32 0.0, %v1133
        %v1135 = vpop.f32.mrb[0].mxu0
        %v1136 = vadd.f32 0.0, %v1135
        %1137 = vmatprep.mubr.f32.mxu0 0.0
        %1138 = vmatmul.mubr.f32.gmra.mrb[0].mxu0 %v1065
        %v1139 = vpop.f32.mrb[0].mxu0
        %v1140 = vadd.f32 0.0, %v1139
        %v1141 = vpop.f32.mrb[0].mxu0
        %v1142 = vadd.f32 0.0, %v1141
        %1143 = vdwg.mxu0
        %1144 = vmatprep.subr.mxu0 %v1022
        %1145 = vmatpush1.msra.mxu0 %v1021
        %1146 = vmatprep.subr.mxu0 %v1029
        %1147 = vmatpush1.msra.mxu0 %v1028
        %1148 = vmatprep.subr.mxu0 %v1036
        %1149 = vmatpush1.msra.mxu0 %v1035
        %1150 = vmatprep.subr.mxu0 %v1043
        %1151 = vmatpush1.msra.mxu0 %v1042
        %1152 = vmatprep.subr.mxu0 %v1050
        %1153 = vmatpush1.msra.mxu0 %v1049
        %1154 = vmatprep.subr.mxu0 %v1057
        %1155 = vmatpush1.msra.mxu0 %v1056
        %1156 = vmatprep.subr.mxu0 0.0
        %1157 = vmatpush1.msra.mxu0 0.0
        %1158 = vmatprep.subr.mxu0 0.0
        %1159 = vmatpush1.msra.mxu0 0.0
        %1160 = vmatprep.subr.mxu0 0.0
        %1161 = vmatpush1.msra.mxu0 0.0
        %1162 = vmatprep.subr.mxu0 0.0
        %1163 = vmatpush1.msra.mxu0 0.0
        %1164 = vmatprep.subr.mxu0 0.0
        %1165 = vmatpush1.msra.mxu0 0.0
        %1166 = vmatprep.subr.mxu0 0.0
        %1167 = vmatpush1.msra.mxu0 0.0
        %1168 = vmatprep.subr.mxu0 0.0
        %1169 = vmatpush1.msra.mxu0 0.0
        %1170 = vmatprep.subr.mxu0 0.0
        %1171 = vmatpush1.msra.mxu0 0.0
        %1172 = vmatprep.subr.mxu0 0.0
        %1173 = vmatpush1.msra.mxu0 0.0
        %1174 = vmatprep.subr.mxu0 0.0
        %1175 = vmatpush1.msra.mxu0 0.0
        %1176 = vmatprep.subr.mxu0 0.0
        %1177 = vmatpush1.msra.mxu0 0.0
        %1178 = vmatprep.subr.mxu0 0.0
        %1179 = vmatpush1.msra.mxu0 0.0
        %1180 = vmatprep.subr.mxu0 0.0
        %1181 = vmatpush1.msra.mxu0 0.0
        %1182 = vmatprep.subr.mxu0 0.0
        %1183 = vmatpush1.msra.mxu0 0.0
        %1184 = vmatprep.subr.mxu0 0.0
        %1185 = vmatpush1.msra.mxu0 0.0
        %1186 = vmatprep.subr.mxu0 0.0
        %1187 = vmatpush1.msra.mxu0 0.0
        %1188 = vmatprep.subr.mxu0 0.0
        %1189 = vmatpush1.msra.mxu0 0.0
        %1190 = vmatprep.subr.mxu0 0.0
        %1191 = vmatpush1.msra.mxu0 0.0
        %1192 = vmatprep.subr.mxu0 0.0
        %1193 = vmatpush1.msra.mxu0 0.0
        %1194 = vmatprep.subr.mxu0 0.0
        %1195 = vmatpush1.msra.mxu0 0.0
        %1196 = vmatprep.subr.mxu0 0.0
        %1197 = vmatpush1.msra.mxu0 0.0
        %1198 = vmatprep.subr.mxu0 0.0
        %1199 = vmatpush1.msra.mxu0 0.0
        %1200 = vmatprep.subr.mxu0 0.0
        %1201 = vmatpush1.msra.mxu0 0.0
        %1202 = vmatprep.subr.mxu0 0.0
        %1203 = vmatpush1.msra.mxu0 0.0
        %1204 = vmatprep.subr.mxu0 0.0
        %1205 = vmatpush1.msra.mxu0 0.0
        %1206 = vmatprep.subr.mxu0 0.0
        %1207 = vmatpush1.msra.mxu0 0.0
        %1208 = vmatprep.mubr.f32.mxu0 0.0
        %1209 = vmatmul.mubr.f32.gmra.mrb[0].mxu0 %v1062
        %v1210 = vpop.f32.mrb[0].mxu0
        %v1211 = vadd.f32 0.0, %v1210
        %v1212 = vpop.f32.mrb[0].mxu0
        %v1213 = vadd.f32 0.0, %v1212
        %1214 = vmatprep.mubr.f32.mxu0 0.0
        %1215 = vmatmul.mubr.f32.gmra.mrb[0].mxu0 %v1065
        %v1216 = vpop.f32.mrb[0].mxu0
        %v1217 = vadd.f32 0.0, %v1216
        %v1218 = vpop.f32.mrb[0].mxu0
        %v1219 = vadd.f32 0.0, %v1218
        %1220 = vdwg.mxu0
        %1221 = vmatprep.subr.mxu0 %v1024
        %1222 = vmatpush1.msra.mxu0 %v1023
        %1223 = vmatprep.subr.mxu0 %v1031
        %1224 = vmatpush1.msra.mxu0 %v1030
        %1225 = vmatprep.subr.mxu0 %v1038
        %1226 = vmatpush1.msra.mxu0 %v1037
        %1227 = vmatprep.subr.mxu0 %v1045
        %1228 = vmatpush1.msra.mxu0 %v1044
        %1229 = vmatprep.subr.mxu0 %v1052
        %1230 = vmatpush1.msra.mxu0 %v1051
        %1231 = vmatprep.subr.mxu0 %v1059
        %1232 = vmatpush1.msra.mxu0 %v1058
        %1233 = vmatprep.subr.mxu0 0.0
        %1234 = vmatpush1.msra.mxu0 0.0
        %1235 = vmatprep.subr.mxu0 0.0
        %1236 = vmatpush1.msra.mxu0 0.0
        %1237 = vmatprep.subr.mxu0 0.0
        %1238 = vmatpush1.msra.mxu0 0.0
        %1239 = vmatprep.subr.mxu0 0.0
        %1240 = vmatpush1.msra.mxu0 0.0
        %1241 = vmatprep.subr.mxu0 0.0
        %1242 = vmatpush1.msra.mxu0 0.0
        %1243 = vmatprep.subr.mxu0 0.0
        %1244 = vmatpush1.msra.mxu0 0.0
        %1245 = vmatprep.subr.mxu0 0.0
        %1246 = vmatpush1.msra.mxu0 0.0
        %1247 = vmatprep.subr.mxu0 0.0
        %1248 = vmatpush1.msra.mxu0 0.0
        %1249 = vmatprep.subr.mxu0 0.0
        %1250 = vmatpush1.msra.mxu0 0.0
        %1251 = vmatprep.subr.mxu0 0.0
        %1252 = vmatpush1.msra.mxu0 0.0
        %1253 = vmatprep.subr.mxu0 0.0
        %1254 = vmatpush1.msra.mxu0 0.0
        %1255 = vmatprep.subr.mxu0 0.0
        %1256 = vmatpush1.msra.mxu0 0.0
        %1257 = vmatprep.subr.mxu0 0.0
        %1258 = vmatpush1.msra.mxu0 0.0
        %1259 = vmatprep.subr.mxu0 0.0
        %1260 = vmatpush1.msra.mxu0 0.0
        %1261 = vmatprep.subr.mxu0 0.0
        %1262 = vmatpush1.msra.mxu0 0.0
        %1263 = vmatprep.subr.mxu0 0.0
        %1264 = vmatpush1.msra.mxu0 0.0
        %1265 = vmatprep.subr.mxu0 0.0
        %1266 = vmatpush1.msra.mxu0 0.0
        %1267 = vmatprep.subr.mxu0 0.0
        %1268 = vmatpush1.msra.mxu0 0.0
        %1269 = vmatprep.subr.mxu0 0.0
        %1270 = vmatpush1.msra.mxu0 0.0
        %1271 = vmatprep.subr.mxu0 0.0
        %1272 = vmatpush1.msra.mxu0 0.0
        %1273 = vmatprep.subr.mxu0 0.0
        %1274 = vmatpush1.msra.mxu0 0.0
        %1275 = vmatprep.subr.mxu0 0.0
        %1276 = vmatpush1.msra.mxu0 0.0
        %1277 = vmatprep.subr.mxu0 0.0
        %1278 = vmatpush1.msra.mxu0 0.0
        %1279 = vmatprep.subr.mxu0 0.0
        %1280 = vmatpush1.msra.mxu0 0.0
        %1281 = vmatprep.subr.mxu0 0.0
        %1282 = vmatpush1.msra.mxu0 0.0
        %1283 = vmatprep.subr.mxu0 0.0
        %1284 = vmatpush1.msra.mxu0 0.0
        %1285 = vmatprep.mubr.f32.mxu0 0.0
        %1286 = vmatmul.mubr.f32.gmra.mrb[0].mxu0 %v1062
        %v1287 = vpop.f32.mrb[0].mxu0
        %v1288 = vadd.f32 0.0, %v1287
        %v1289 = vpop.f32.mrb[0].mxu0
        %v1290 = vadd.f32 0.0, %v1289
        %1291 = vmatprep.mubr.f32.mxu0 0.0
        %1292 = vmatmul.mubr.f32.gmra.mrb[0].mxu0 %v1065
        %v1293 = vpop.f32.mrb[0].mxu0
        %v1294 = vadd.f32 0.0, %v1293
        %v1295 = vpop.f32.mrb[0].mxu0
        %v1296 = vadd.f32 0.0, %v1295
        %1297 = vdwg.mxu0
        %1298 = vmatprep.subr.mxu0 0.0
        %1299 = vmatpush1.msra.mxu0 %v1025
        %1300 = vmatprep.subr.mxu0 0.0
        %1301 = vmatpush1.msra.mxu0 %v1032
        %1302 = vmatprep.subr.mxu0 0.0
        %1303 = vmatpush1.msra.mxu0 %v1039
        %1304 = vmatprep.subr.mxu0 0.0
        %1305 = vmatpush1.msra.mxu0 %v1046
        %1306 = vmatprep.subr.mxu0 0.0
        %1307 = vmatpush1.msra.mxu0 %v1053
        %1308 = vmatprep.subr.mxu0 0.0
        %1309 = vmatpush1.msra.mxu0 %v1060
        %1310 = vmatprep.subr.mxu0 0.0
        %1311 = vmatpush1.msra.mxu0 0.0
        %1312 = vmatprep.subr.mxu0 0.0
        %1313 = vmatpush1.msra.mxu0 0.0
        %1314 = vmatprep.subr.mxu0 0.0
        %1315 = vmatpush1.msra.mxu0 0.0
        %1316 = vmatprep.subr.mxu0 0.0
        %1317 = vmatpush1.msra.mxu0 0.0
        %1318 = vmatprep.subr.mxu0 0.0
        %1319 = vmatpush1.msra.mxu0 0.0
        %1320 = vmatprep.subr.mxu0 0.0
        %1321 = vmatpush1.msra.mxu0 0.0
        %1322 = vmatprep.subr.mxu0 0.0
        %1323 = vmatpush1.msra.mxu0 0.0
        %1324 = vmatprep.subr.mxu0 0.0
        %1325 = vmatpush1.msra.mxu0 0.0
        %1326 = vmatprep.subr.mxu0 0.0
        %1327 = vmatpush1.msra.mxu0 0.0
        %1328 = vmatprep.subr.mxu0 0.0
        %1329 = vmatpush1.msra.mxu0 0.0
        %1330 = vmatprep.subr.mxu0 0.0
        %1331 = vmatpush1.msra.mxu0 0.0
        %1332 = vmatprep.subr.mxu0 0.0
        %1333 = vmatpush1.msra.mxu0 0.0
        %1334 = vmatprep.subr.mxu0 0.0
        %1335 = vmatpush1.msra.mxu0 0.0
        %1336 = vmatprep.subr.mxu0 0.0
        %1337 = vmatpush1.msra.mxu0 0.0
        %1338 = vmatprep.subr.mxu0 0.0
        %1339 = vmatpush1.msra.mxu0 0.0
        %1340 = vmatprep.subr.mxu0 0.0
        %1341 = vmatpush1.msra.mxu0 0.0
        %1342 = vmatprep.subr.mxu0 0.0
        %1343 = vmatpush1.msra.mxu0 0.0
        %1344 = vmatprep.subr.mxu0 0.0
        %1345 = vmatpush1.msra.mxu0 0.0
        %1346 = vmatprep.subr.mxu0 0.0
        %1347 = vmatpush1.msra.mxu0 0.0
        %1348 = vmatprep.subr.mxu0 0.0
        %1349 = vmatpush1.msra.mxu0 0.0
        %1350 = vmatprep.subr.mxu0 0.0
        %1351 = vmatpush1.msra.mxu0 0.0
        %1352 = vmatprep.subr.mxu0 0.0
        %1353 = vmatpush1.msra.mxu0 0.0
        %1354 = vmatprep.subr.mxu0 0.0
        %1355 = vmatpush1.msra.mxu0 0.0
        %1356 = vmatprep.subr.mxu0 0.0
        %1357 = vmatpush1.msra.mxu0 0.0
        %1358 = vmatprep.subr.mxu0 0.0
        %1359 = vmatpush1.msra.mxu0 0.0
        %1360 = vmatprep.subr.mxu0 0.0
        %1361 = vmatpush1.msra.mxu0 0.0
        %1362 = vmatprep.mubr.f32.mxu0 0.0
        %1363 = vmatmul.mubr.f32.gmra.mrb[0].mxu0 %v1062
        %v1364 = vpop.f32.mrb[0].mxu0
        %v1365 = vadd.f32 0.0, %v1364
        %v1366 = vpop.f32.mrb[0].mxu0
        %1367 = vmatprep.mubr.f32.mxu0 0.0
        %1368 = vmatmul.mubr.f32.gmra.mrb[0].mxu0 %v1065
        %v1369 = vpop.f32.mrb[0].mxu0
        %v1370 = vadd.f32 0.0, %v1369
        %v1371 = vpop.f32.mrb[0].mxu0
        %1372 = vdwg.mxu0
        %v1373 = vadd.f32 %v1000, %v1134
        %v1374 = vadd.f32 %v1001, %v1136
        %v1375 = vadd.f32 %v1002, %v1211
        %v1376 = vadd.f32 %v1003, %v1213
        %v1377 = vadd.f32 %v1004, %v1288
        %v1378 = vadd.f32 %v1005, %v1290
        %v1379 = vadd.f32 %v1006, %v1365
        %v1380 = vadd.f32 %v1007, %v1140
        %v1381 = vadd.f32 %v1008, %v1142
        %v1382 = vadd.f32 %v1009, %v1217
        %v1383 = vadd.f32 %v1010, %v1219
        %v1384 = vadd.f32 %v1011, %v1294
        %v1385 = vadd.f32 %v1012, %v1296
        %v1386 = vadd.f32 %v1013, %v1370
        %1387 = vst [vmem:[%s229] sm:$0xff] %v1373
        %1388 = vst [vmem:[%s229 + $0x8] sm:$0xff] %v1374
        %1389 = vst [vmem:[%s229 + $0x10] sm:$0xff] %v1375
        %1390 = vst [vmem:[%s229 + $0x18] sm:$0xff] %v1376
        %1391 = vst [vmem:[%s229 + $0x20] sm:$0xff] %v1377
        %1392 = vst [vmem:[%s229 + $0x28] sm:$0xff] %v1378
        %1393 = vst [vmem:[%s229 + $0x30] sm:$0xff] %v1379
        %1394 = vst [vmem:[%s229 + $0x38] sm:$0x3f] %v1380
        %1395 = vst [vmem:[%s229 + $0x40] sm:$0x3f] %v1381
        %1396 = vst [vmem:[%s229 + $0x48] sm:$0x3f] %v1382
        %1397 = vst [vmem:[%s229 + $0x50] sm:$0x3f] %v1383
        %1398 = vst [vmem:[%s229 + $0x58] sm:$0x3f] %v1384
        %1399 = vst [vmem:[%s229 + $0x60] sm:$0x3f] %v1385
        %1400 = vst [vmem:[%s229 + $0x68] sm:$0x3f] %v1386
        %s1401 = smul.u32 2, %s23
        %p1402 = scmp.lt.s32.totalorder %s22, 1
        %s1403 = scalar_select %p1402, %s22, 1
        %p1404 = scmp.lt.s32.totalorder %s1401, 1
        %s1405 = scalar_select %p1404, %s1401, 1
        %s1406 = smul.addr %s1405, 7
        %s1407 = smul.addr %s1403, 14
        %s1408 = sadd.s32 %s1406, %s1407
        %s1409 = smul.addr %s1408, 8
        %s1410 = scalar_lea.vmem %s3, %s1409
        // Predicated region
        $region41: #{tpu_custom_call.1} parent=31 // pred_check
          %p1411 = pneg %p118
        $region42: #{tpu_custom_call.1} parent=31 // pred_check_branch
          %1413 = sbr.rel (%p1411) target = $region44
        $region43: #{tpu_custom_call.1} parent=31 // pred_region
          %s1414 = smul.u32 2, %s23
        $region44: #{tpu_custom_call.1} parent=31 // pred_fallthru
          _
      $region32: #{tpu_custom_call.1} parent=5 // pred_fallthru
        _
      %p1415 = scmp.le.s32.totalorder 2, %s13
      // Predicated region
      $region45: #{tpu_custom_call.1} parent=5 // pred_check
        %p1416 = pneg %p1415
      $region46: #{tpu_custom_call.1} parent=5 // pred_check_branch
        %1418 = sbr.rel (%p1416) target = $region48
      $region47: #{tpu_custom_call.1} parent=5 // pred_region
        %s1419 = ssub.s32 %s13, 2
        // Predicated region
        $region49: #{tpu_custom_call.1} parent=47 // pred_check
          %p1420 = pneg %p124
        $region50: #{tpu_custom_call.1} parent=47 // pred_check_branch
          %1422 = sbr.rel (%p1420) target = $region52
        $region51: #{tpu_custom_call.1} parent=47 // pred_region
          %s1423 = smul.u32 2, %s25
          %p1424 = scmp.lt.s32.totalorder %s24, 1
          %s1425 = scalar_select %p1424, %s24, 1
          %p1426 = scmp.lt.s32.totalorder %s1423, 1
          %s1427 = scalar_select %p1426, %s1423, 1
          %s1428 = smul.addr %s1427, 7
          %s1429 = smul.addr %s1425, 14
          %s1430 = sadd.s32 %s1428, %s1429
          %s1431 = smul.addr %s1430, 8
          %s1432 = scalar_lea.vmem %s3, %s1431
        $region52: #{tpu_custom_call.1} parent=47 // pred_fallthru
          _
      $region48: #{tpu_custom_call.1} parent=5 // pred_fallthru
        _
    $region6: #{tpu_custom_call.1} parent=1 // loop_footer
      %s17 = sadd.s32 1, %s13
    $region7: #{tpu_custom_call.1} parent=1 // loop_footer_branch
      %12 = sbr.rel target = $region3
    $region8: #{tpu_custom_call.1} parent=1 // loop_exit
      _
    %1433 = vsyncpa [#allocation3], 1
    %s1434 = scalar_lea.sflag [#allocation3], 1
    %1435 = vsyncpa %s1434, 1
    %1436 = vsyncpa [#allocation5], 1

</llo_original>
